<compile_context>
chip_gen: v7x
topology: tpu7x:2x2x1
jax: 0.10.0
libtpu: 0.0.40
codegen_flags: <defaults>
</compile_context>

<pallas_src>
import jax
import jax.numpy as jnp
from jax.experimental import pallas as pl
from jax.experimental.pallas import tpu as pltpu

EPS = 1e-5


# ---------------------------------------------------------------------------
# Fused kernel: conv1+BN1+ReLU -> maxpool -> residual block(s) -> avgpool -> fc
# for one tile of the batch.  All intermediates live in VMEM.
# ---------------------------------------------------------------------------
def _make_fused_kernel(TB, L1, L2, F, C, n_cat, n_res):

    def kernel(*args):
        n_in = 4 + 4 * n_res + 2
        in_refs, out_ref = args[:n_in], args[n_in]
        y1_s, pad_s = args[n_in + 1:]
        xe_ref, xo_ref, w1_ref, b1_ref = in_refs[:4]
        blk_refs = in_refs[4:4 + 4 * n_res]
        wfc_ref, bfc_ref = in_refs[4 + 4 * n_res:]

        # ---- conv1 (k=7, stride 2, pad 3) + folded BN1 + ReLU -------------
        # Stride-2 conv expressed as 7 unit-stride taps over the even / odd
        # phases of the zero-padded input (prepared in the JAX glue), so no
        # im2col buffer is ever materialised in HBM.
        acc = jnp.zeros((TB * L1, C), jnp.float32)
        for t in range(7):
            src_ref = xe_ref if t % 2 == 0 else xo_ref
            off = t // 2
            xs = src_ref[:, off:off + L1, :].reshape(TB * L1, F)   # bf16
            acc = acc + jnp.dot(xs, w1_ref[t],
                                preferred_element_type=jnp.float32)
        y1_s[...] = jnp.maximum(acc + b1_ref[...], 0.0)            # (TB*L1, C)

        # ---- maxpool (k=3, stride 2, pad 1), fused ------------------------
        ev = y1_s[pl.ds(0, TB * L2, stride=2), :].reshape(TB, L2, C)  # y1[2j]
        od = y1_s[pl.ds(1, TB * L2, stride=2), :].reshape(TB, L2, C)  # y1[2j+1]
        # prev_od[b, j] = y1[b, 2j-1], with the -inf maxpool padding at j == 0.
        pad_s[:, 0:1, :] = jnp.full((TB, 1, C), -jnp.inf, jnp.float32)
        pad_s[:, 1:L2 + 1, :] = od
        prev_od = pad_s[:, 0:L2, :]
        cur = jnp.maximum(jnp.maximum(ev, od), prev_od)            # (TB, L2, C)

        # ---- helper: 3-tap conv (stride 1, pad 1) with folded BN ----------
        def conv3_same(x3, w_ref, b_ref):
            pad_s[:, 0:1, :] = jnp.zeros((TB, 1, C), jnp.float32)
            pad_s[:, L2 + 1:L2 + 2, :] = jnp.zeros((TB, 1, C), jnp.float32)
            pad_s[:, 1:L2 + 1, :] = x3
            a = jnp.zeros((TB * L2, C), jnp.float32)
            for t in range(3):
                xt = pad_s[:, t:t + L2, :].astype(jnp.bfloat16)
                a = a + jnp.dot(xt.reshape(TB * L2, C), w_ref[t],
                                preferred_element_type=jnp.float32)
            return (a + b_ref[...]).reshape(TB, L2, C)

        # ---- residual blocks (eval mode: Dropout == identity) -------------
        for blk in range(n_res):
            wa_ref, ba_ref, wb_ref, bb_ref = blk_refs[4 * blk:4 * blk + 4]
            res = cur
            h = jnp.maximum(conv3_same(cur, wa_ref, ba_ref), 0.0)
            z = conv3_same(h, wb_ref, bb_ref)
            cur = jnp.maximum(z + res, 0.0)

        # ---- avgpool over the full remaining length + fc -------------------
        pooled = jnp.mean(cur, axis=1)                             # (TB, C) f32
        out_ref[...] = (jnp.dot(pooled, wfc_ref[...],
                                preferred_element_type=jnp.float32)
                        + bfc_ref[...])

    return kernel


# ---------------------------------------------------------------------------
# JAX glue: BN folding, even/odd phase split, BlockSpecs, pallas_call.
# ---------------------------------------------------------------------------
def _fold_bn_into_conv(w_oik, bias, gamma, beta, mean, var):
    """Fold eval-mode BatchNorm1d (running stats) and the conv bias into a
    channels-last matmul weight.  w_oik: PyTorch Conv1d weight (C_out, C_in, K).
    Returns ((K, C_in, C_out) bf16 weight, (1, C_out) f32 bias)."""
    s = gamma * jax.lax.rsqrt(var + EPS)                       # (C_out,)
    w = jnp.transpose(w_oik, (2, 1, 0)) * s[None, None, :]
    b = (bias - mean) * s + beta
    return w.astype(jnp.bfloat16), b.reshape(1, -1).astype(jnp.float32)


def _resident_spec(arr):
    """BlockSpec for a weight that stays resident in VMEM for every grid step."""
    zeros = (0,) * arr.ndim
    return pl.BlockSpec(arr.shape, lambda i, _z=zeros: _z)


def resnet_like_1d_forward(params, x, *, batch_tile=8):
    """x: (B, seq_length, n_features) float -> (B, n_categories).

    Mirrors the eval-mode forward of the PyTorch ResNetLike1D
    (permute -> conv1/bn1/relu -> maxpool -> residual blocks -> avgpool -> fc)
    in channels-last layout, fused into one Pallas kernel gridded over batch
    tiles."""
    x = x.astype(jnp.float32)
    B, S, F = x.shape
    if S % 4 != 0:
        raise ValueError("seq_length must be a multiple of 4")
    L1, L2 = S // 2, S // 4
    C = params["conv1_w"].shape[0]
    n_cat = params["fc_w"].shape[0]
    n_res = len(params["blocks"])
    if S // (2 ** (n_res + 1)) != L2:
        # AvgPool1d(seq_length // 2**num_blocks) collapses to a full-length
        # mean only for the module's num_blocks=2 configuration.
        raise ValueError("unsupported num_blocks for the fused avgpool")

    # Fold BatchNorm (running stats) + conv bias into the matmul weights.
    w1, b1 = _fold_bn_into_conv(params["conv1_w"], params["conv1_b"],
                                *params["bn1"])
    blk_ops = []
    for blk in params["blocks"]:
        wa, ba = _fold_bn_into_conv(blk["conv1_w"], blk["conv1_b"], *blk["bn1"])
        wb, bb = _fold_bn_into_conv(blk["conv2_w"], blk["conv2_b"], *blk["bn2"])
        blk_ops += [wa, ba, wb, bb]
    wfc = params["fc_w"].T.astype(jnp.float32)                 # (C, n_cat)
    bfc = params["fc_b"].reshape(1, -1).astype(jnp.float32)    # (1, n_cat)

    # Stride-2 conv1: pad once and split into even/odd phases (cheap XLA glue,
    # O(|x|) traffic) so the kernel only needs unit-stride taps, no im2col.
    xp = jnp.pad(x, ((0, 0), (3, 3), (0, 0)))
    xe = xp[:, 0::2, :].astype(jnp.bfloat16)                   # (B, L1+3, F)
    xo = xp[:, 1::2, :].astype(jnp.bfloat16)                   # (B, L1+3, F)
    Le = xe.shape[1]

    # Batch tile: a multiple of 8 (sublane rule for the (TB, n_cat) output
    # block) when it divides B, otherwise the whole batch in one grid step.
    TB = batch_tile if (batch_tile % 8 == 0 and B % batch_tile == 0) else B
    grid = (B // TB,)

    kernel = _make_fused_kernel(TB, L1, L2, F, C, n_cat, n_res)
    operands = [xe, xo, w1, b1, *blk_ops, wfc, bfc]
    in_specs = ([pl.BlockSpec((TB, Le, F), lambda i: (i, 0, 0)),
                 pl.BlockSpec((TB, Le, F), lambda i: (i, 0, 0))]
                + [_resident_spec(a) for a in operands[2:]])

    return pl.pallas_call(
        kernel,
        out_shape=jax.ShapeDtypeStruct((B, n_cat), jnp.float32),
        grid=grid,
        in_specs=in_specs,
        out_specs=pl.BlockSpec((TB, n_cat), lambda i: (i, 0)),
        scratch_shapes=[pltpu.VMEM((TB * L1, C), jnp.float32),     # conv1 out
                        pltpu.VMEM((TB, L2 + 2, C), jnp.float32)],  # padded view
        compiler_params=pltpu.CompilerParams(
            dimension_semantics=("parallel",),
            vmem_limit_bytes=48 * 1024 * 1024),
    )(*operands)


# ---------------------------------------------------------------------------
# Random parameters in PyTorch layout (Conv1d weight: (C_out, C_in, K)).
# ---------------------------------------------------------------------------
def init_params(key, n_features, base_filters, n_categories, num_blocks=2):
    C = base_filters
    n_res = num_blocks - 1
    kit = iter(jax.random.split(key, 6 + 6 * n_res))

    def conv_init(k, c_out, c_in, kw):
        scale = 1.0 / jnp.sqrt(jnp.float32(c_in * kw))
        return jax.random.normal(k, (c_out, c_in, kw), jnp.float32) * scale

    def bn_init(k, c):
        k1, k2, k3, k4 = jax.random.split(k, 4)
        gamma = 1.0 + 0.1 * jax.random.normal(k1, (c,), jnp.float32)
        beta = 0.1 * jax.random.normal(k2, (c,), jnp.float32)
        mean = 0.1 * jax.random.normal(k3, (c,), jnp.float32)
        var = 1.0 + 0.1 * jnp.abs(jax.random.normal(k4, (c,), jnp.float32))
        return (gamma, beta, mean, var)

    params = {
        "conv1_w": conv_init(next(kit), C, n_features, 7),
        "conv1_b": 0.1 * jax.random.normal(next(kit), (C,), jnp.float32),
        "bn1": bn_init(next(kit), C),
        "blocks": [],
        "fc_w": (jax.random.normal(next(kit), (n_categories, C), jnp.float32)
                 / jnp.sqrt(jnp.float32(C))),
        "fc_b": 0.1 * jax.random.normal(next(kit), (n_categories,), jnp.float32),
    }
    for _ in range(n_res):
        params["blocks"].append({
            "conv1_w": conv_init(next(kit), C, C, 3),
            "conv1_b": 0.1 * jax.random.normal(next(kit), (C,), jnp.float32),
            "bn1": bn_init(next(kit), C),
            "conv2_w": conv_init(next(kit), C, C, 3),
            "conv2_b": 0.1 * jax.random.normal(next(kit), (C,), jnp.float32),
            "bn2": bn_init(next(kit), C),
        })
    return params


if __name__ == "__main__":
    # Small shapes consistent with the module (seq_length=32 so the pooling
    # arithmetic matches: 32 --conv1 s2--> 16 --maxpool s2--> 8 --avgpool(8)--> 1).
    B, S, F = 2, 32, 16
    base_filters, n_categories, num_blocks = 32, 10, 2

    kx, kp = jax.random.split(jax.random.PRNGKey(0))
    x = jax.random.normal(kx, (B, S, F), jnp.float32)
    params = init_params(kp, F, base_filters, n_categories, num_blocks)

    fwd = jax.jit(resnet_like_1d_forward)
    out = fwd(params, x)
    jax.block_until_ready(out)
    assert out.shape == (B, n_categories)
    assert bool(jnp.all(jnp.isfinite(out)))
    print("KERNEL_OK")
</pallas_src>

<mosaic_0001>
module attributes {stable_mosaic.version = 11 : i64} {
  func.func @kernel(%arg0: i32, %arg1: memref<2x19x16xbf16, #tpu.memory_space<vmem>>, %arg2: memref<2x19x16xbf16, #tpu.memory_space<vmem>>, %arg3: memref<7x16x32xbf16, #tpu.memory_space<vmem>>, %arg4: memref<1x32xf32, #tpu.memory_space<vmem>>, %arg5: memref<3x32x32xbf16, #tpu.memory_space<vmem>>, %arg6: memref<1x32xf32, #tpu.memory_space<vmem>>, %arg7: memref<3x32x32xbf16, #tpu.memory_space<vmem>>, %arg8: memref<1x32xf32, #tpu.memory_space<vmem>>, %arg9: memref<32x10xf32, #tpu.memory_space<vmem>>, %arg10: memref<1x10xf32, #tpu.memory_space<vmem>>, %arg11: memref<2x10xf32, #tpu.memory_space<vmem>>, %arg12: memref<32x32xf32, #tpu.memory_space<vmem>>, %arg13: memref<2x10x32xf32, #tpu.memory_space<vmem>>) attributes {dimension_semantics = [#tpu.dimension_semantics<parallel>], iteration_bounds = array<i64: 1>, scalar_prefetch = 0 : i64, scratch_operands = 2 : i64, tpu.core_type = #tpu.core_type<tc>, window_params = [{transform_indices = @transform_0, window_bounds = array<i64: 2, 19, 16>}, {transform_indices = @transform_1, window_bounds = array<i64: 2, 19, 16>}, {pipeline_mode = #tpu.pipeline_mode<synchronous>, transform_indices = @transform_2, window_bounds = array<i64: 7, 16, 32>}, {pipeline_mode = #tpu.pipeline_mode<synchronous>, transform_indices = @transform_3, window_bounds = array<i64: 1, 32>}, {pipeline_mode = #tpu.pipeline_mode<synchronous>, transform_indices = @transform_4, window_bounds = array<i64: 3, 32, 32>}, {pipeline_mode = #tpu.pipeline_mode<synchronous>, transform_indices = @transform_5, window_bounds = array<i64: 1, 32>}, {pipeline_mode = #tpu.pipeline_mode<synchronous>, transform_indices = @transform_6, window_bounds = array<i64: 3, 32, 32>}, {pipeline_mode = #tpu.pipeline_mode<synchronous>, transform_indices = @transform_7, window_bounds = array<i64: 1, 32>}, {pipeline_mode = #tpu.pipeline_mode<synchronous>, transform_indices = @transform_8, window_bounds = array<i64: 32, 10>}, {pipeline_mode = #tpu.pipeline_mode<synchronous>, transform_indices = @transform_9, window_bounds = array<i64: 1, 10>}, {transform_indices = @transform_10, window_bounds = array<i64: 2, 10>}]} {
    %cst = arith.constant 0.000000e+00 : f32
    %0 = vector.broadcast %cst : f32 to vector<32x32xf32>
    %c0 = arith.constant 0 : index
    %c0_0 = arith.constant 0 : index
    %c0_1 = arith.constant 0 : index
    %1 = vector.load %arg1[%c0, %c0_0, %c0_1] : memref<2x19x16xbf16, #tpu.memory_space<vmem>>, vector<2x16x16xbf16>
    %2 = vector.shape_cast %1 : vector<2x16x16xbf16> to vector<32x16xbf16>
    %c0_2 = arith.constant 0 : index
    %c0_3 = arith.constant 0 : index
    %c0_4 = arith.constant 0 : index
    %3 = vector.load %arg3[%c0_2, %c0_3, %c0_4] : memref<7x16x32xbf16, #tpu.memory_space<vmem>>, vector<1x16x32xbf16>
    %4 = vector.shape_cast %3 : vector<1x16x32xbf16> to vector<16x32xbf16>
    %cst_5 = arith.constant dense<0.000000e+00> : vector<32x32xf32>
    %5 = tpu.matmul %2, %4, %cst_5 {dimension_numbers = #tpu.dot_dimension_numbers<[1], [0], [0], [1], [0, 0, 1, 1], [], []>} : vector<32x16xbf16>, vector<16x32xbf16>, vector<32x32xf32> -> vector<32x32xf32>
    %6 = arith.addf %0, %5 : vector<32x32xf32>
    %c0_6 = arith.constant 0 : index
    %c0_7 = arith.constant 0 : index
    %c0_8 = arith.constant 0 : index
    %7 = vector.load %arg2[%c0_6, %c0_7, %c0_8] : memref<2x19x16xbf16, #tpu.memory_space<vmem>>, vector<2x16x16xbf16>
    %8 = vector.shape_cast %7 : vector<2x16x16xbf16> to vector<32x16xbf16>
    %c1 = arith.constant 1 : index
    %c0_9 = arith.constant 0 : index
    %c0_10 = arith.constant 0 : index
    %9 = vector.load %arg3[%c1, %c0_9, %c0_10] : memref<7x16x32xbf16, #tpu.memory_space<vmem>>, vector<1x16x32xbf16>
    %10 = vector.shape_cast %9 : vector<1x16x32xbf16> to vector<16x32xbf16>
    %cst_11 = arith.constant dense<0.000000e+00> : vector<32x32xf32>
    %11 = tpu.matmul %8, %10, %cst_11 {dimension_numbers = #tpu.dot_dimension_numbers<[1], [0], [0], [1], [0, 0, 1, 1], [], []>} : vector<32x16xbf16>, vector<16x32xbf16>, vector<32x32xf32> -> vector<32x32xf32>
    %12 = arith.addf %6, %11 : vector<32x32xf32>
    %c0_12 = arith.constant 0 : index
    %c1_13 = arith.constant 1 : index
    %c0_14 = arith.constant 0 : index
    %13 = vector.load %arg1[%c0_12, %c1_13, %c0_14] : memref<2x19x16xbf16, #tpu.memory_space<vmem>>, vector<2x16x16xbf16>
    %14 = vector.shape_cast %13 : vector<2x16x16xbf16> to vector<32x16xbf16>
    %c2 = arith.constant 2 : index
    %c0_15 = arith.constant 0 : index
    %c0_16 = arith.constant 0 : index
    %15 = vector.load %arg3[%c2, %c0_15, %c0_16] : memref<7x16x32xbf16, #tpu.memory_space<vmem>>, vector<1x16x32xbf16>
    %16 = vector.shape_cast %15 : vector<1x16x32xbf16> to vector<16x32xbf16>
    %cst_17 = arith.constant dense<0.000000e+00> : vector<32x32xf32>
    %17 = tpu.matmul %14, %16, %cst_17 {dimension_numbers = #tpu.dot_dimension_numbers<[1], [0], [0], [1], [0, 0, 1, 1], [], []>} : vector<32x16xbf16>, vector<16x32xbf16>, vector<32x32xf32> -> vector<32x32xf32>
    %18 = arith.addf %12, %17 : vector<32x32xf32>
    %c0_18 = arith.constant 0 : index
    %c1_19 = arith.constant 1 : index
    %c0_20 = arith.constant 0 : index
    %19 = vector.load %arg2[%c0_18, %c1_19, %c0_20] : memref<2x19x16xbf16, #tpu.memory_space<vmem>>, vector<2x16x16xbf16>
    %20 = vector.shape_cast %19 : vector<2x16x16xbf16> to vector<32x16xbf16>
    %c3 = arith.constant 3 : index
    %c0_21 = arith.constant 0 : index
    %c0_22 = arith.constant 0 : index
    %21 = vector.load %arg3[%c3, %c0_21, %c0_22] : memref<7x16x32xbf16, #tpu.memory_space<vmem>>, vector<1x16x32xbf16>
    %22 = vector.shape_cast %21 : vector<1x16x32xbf16> to vector<16x32xbf16>
    %cst_23 = arith.constant dense<0.000000e+00> : vector<32x32xf32>
    %23 = tpu.matmul %20, %22, %cst_23 {dimension_numbers = #tpu.dot_dimension_numbers<[1], [0], [0], [1], [0, 0, 1, 1], [], []>} : vector<32x16xbf16>, vector<16x32xbf16>, vector<32x32xf32> -> vector<32x32xf32>
    %24 = arith.addf %18, %23 : vector<32x32xf32>
    %c0_24 = arith.constant 0 : index
    %c2_25 = arith.constant 2 : index
    %c0_26 = arith.constant 0 : index
    %25 = vector.load %arg1[%c0_24, %c2_25, %c0_26] : memref<2x19x16xbf16, #tpu.memory_space<vmem>>, vector<2x16x16xbf16>
    %26 = vector.shape_cast %25 : vector<2x16x16xbf16> to vector<32x16xbf16>
    %c4 = arith.constant 4 : index
    %c0_27 = arith.constant 0 : index
    %c0_28 = arith.constant 0 : index
    %27 = vector.load %arg3[%c4, %c0_27, %c0_28] : memref<7x16x32xbf16, #tpu.memory_space<vmem>>, vector<1x16x32xbf16>
    %28 = vector.shape_cast %27 : vector<1x16x32xbf16> to vector<16x32xbf16>
    %cst_29 = arith.constant dense<0.000000e+00> : vector<32x32xf32>
    %29 = tpu.matmul %26, %28, %cst_29 {dimension_numbers = #tpu.dot_dimension_numbers<[1], [0], [0], [1], [0, 0, 1, 1], [], []>} : vector<32x16xbf16>, vector<16x32xbf16>, vector<32x32xf32> -> vector<32x32xf32>
    %30 = arith.addf %24, %29 : vector<32x32xf32>
    %c0_30 = arith.constant 0 : index
    %c2_31 = arith.constant 2 : index
    %c0_32 = arith.constant 0 : index
    %31 = vector.load %arg2[%c0_30, %c2_31, %c0_32] : memref<2x19x16xbf16, #tpu.memory_space<vmem>>, vector<2x16x16xbf16>
    %32 = vector.shape_cast %31 : vector<2x16x16xbf16> to vector<32x16xbf16>
    %c5 = arith.constant 5 : index
    %c0_33 = arith.constant 0 : index
    %c0_34 = arith.constant 0 : index
    %33 = vector.load %arg3[%c5, %c0_33, %c0_34] : memref<7x16x32xbf16, #tpu.memory_space<vmem>>, vector<1x16x32xbf16>
    %34 = vector.shape_cast %33 : vector<1x16x32xbf16> to vector<16x32xbf16>
    %cst_35 = arith.constant dense<0.000000e+00> : vector<32x32xf32>
    %35 = tpu.matmul %32, %34, %cst_35 {dimension_numbers = #tpu.dot_dimension_numbers<[1], [0], [0], [1], [0, 0, 1, 1], [], []>} : vector<32x16xbf16>, vector<16x32xbf16>, vector<32x32xf32> -> vector<32x32xf32>
    %36 = arith.addf %30, %35 : vector<32x32xf32>
    %c0_36 = arith.constant 0 : index
    %c3_37 = arith.constant 3 : index
    %c0_38 = arith.constant 0 : index
    %37 = vector.load %arg1[%c0_36, %c3_37, %c0_38] : memref<2x19x16xbf16, #tpu.memory_space<vmem>>, vector<2x16x16xbf16>
    %38 = vector.shape_cast %37 : vector<2x16x16xbf16> to vector<32x16xbf16>
    %c6 = arith.constant 6 : index
    %c0_39 = arith.constant 0 : index
    %c0_40 = arith.constant 0 : index
    %39 = vector.load %arg3[%c6, %c0_39, %c0_40] : memref<7x16x32xbf16, #tpu.memory_space<vmem>>, vector<1x16x32xbf16>
    %40 = vector.shape_cast %39 : vector<1x16x32xbf16> to vector<16x32xbf16>
    %cst_41 = arith.constant dense<0.000000e+00> : vector<32x32xf32>
    %41 = tpu.matmul %38, %40, %cst_41 {dimension_numbers = #tpu.dot_dimension_numbers<[1], [0], [0], [1], [0, 0, 1, 1], [], []>} : vector<32x16xbf16>, vector<16x32xbf16>, vector<32x32xf32> -> vector<32x32xf32>
    %42 = arith.addf %36, %41 : vector<32x32xf32>
    %c0_42 = arith.constant 0 : index
    %c0_43 = arith.constant 0 : index
    %43 = vector.load %arg4[%c0_42, %c0_43] : memref<1x32xf32, #tpu.memory_space<vmem>>, vector<1x32xf32>
    %44 = vector.broadcast %43 : vector<1x32xf32> to vector<32x32xf32>
    %45 = arith.addf %42, %44 : vector<32x32xf32>
    %cst_44 = arith.constant 0.000000e+00 : f32
    %46 = vector.broadcast %cst_44 : f32 to vector<32x32xf32>
    %47 = arith.maximumf %45, %46 : vector<32x32xf32>
    %c0_45 = arith.constant 0 : index
    %c0_46 = arith.constant 0 : index
    %48 = vector.load %arg12[%c0_45, %c0_46] : memref<32x32xf32, #tpu.memory_space<vmem>>, vector<32x32xf32>
    tpu.vector_store %arg12[%c0_45, %c0_46], %47 {strides = array<i32>} : memref<32x32xf32, #tpu.memory_space<vmem>>, vector<32x32xf32>,
    %c0_47 = arith.constant 0 : index
    %c0_48 = arith.constant 0 : index
    %49 = tpu.strided_load %arg12[%c0_47, %c0_48] {strides = array<i32: 2, 1>} : memref<32x32xf32, #tpu.memory_space<vmem>>, vector<16x32xf32>
    %50 = vector.shape_cast %49 : vector<16x32xf32> to vector<2x8x32xf32>
    %c1_49 = arith.constant 1 : index
    %c0_50 = arith.constant 0 : index
    %51 = tpu.strided_load %arg12[%c1_49, %c0_50] {strides = array<i32: 2, 1>} : memref<32x32xf32, #tpu.memory_space<vmem>>, vector<16x32xf32>
    %52 = vector.shape_cast %51 : vector<16x32xf32> to vector<2x8x32xf32>
    %cst_51 = arith.constant 0xFF800000 : f32
    %53 = vector.broadcast %cst_51 : f32 to vector<2x1x32xf32>
    %c0_52 = arith.constant 0 : index
    %c0_53 = arith.constant 0 : index
    %c0_54 = arith.constant 0 : index
    %54 = vector.load %arg13[%c0_52, %c0_53, %c0_54] : memref<2x10x32xf32, #tpu.memory_space<vmem>>, vector<2x1x32xf32>
    tpu.vector_store %arg13[%c0_52, %c0_53, %c0_54], %53 {strides = array<i32>} : memref<2x10x32xf32, #tpu.memory_space<vmem>>, vector<2x1x32xf32>,
    %c0_55 = arith.constant 0 : index
    %c1_56 = arith.constant 1 : index
    %c0_57 = arith.constant 0 : index
    %55 = vector.load %arg13[%c0_55, %c1_56, %c0_57] : memref<2x10x32xf32, #tpu.memory_space<vmem>>, vector<2x8x32xf32>
    tpu.vector_store %arg13[%c0_55, %c1_56, %c0_57], %52 {strides = array<i32>} : memref<2x10x32xf32, #tpu.memory_space<vmem>>, vector<2x8x32xf32>,
    %c0_58 = arith.constant 0 : index
    %c0_59 = arith.constant 0 : index
    %c0_60 = arith.constant 0 : index
    %56 = vector.load %arg13[%c0_58, %c0_59, %c0_60] : memref<2x10x32xf32, #tpu.memory_space<vmem>>, vector<2x8x32xf32>
    %57 = arith.maximumf %50, %52 : vector<2x8x32xf32>
    %58 = arith.maximumf %57, %56 : vector<2x8x32xf32>
    %cst_61 = arith.constant 0.000000e+00 : f32
    %59 = vector.broadcast %cst_61 : f32 to vector<2x1x32xf32>
    %c0_62 = arith.constant 0 : index
    %c0_63 = arith.constant 0 : index
    %c0_64 = arith.constant 0 : index
    %60 = vector.load %arg13[%c0_62, %c0_63, %c0_64] : memref<2x10x32xf32, #tpu.memory_space<vmem>>, vector<2x1x32xf32>
    tpu.vector_store %arg13[%c0_62, %c0_63, %c0_64], %59 {strides = array<i32>} : memref<2x10x32xf32, #tpu.memory_space<vmem>>, vector<2x1x32xf32>,
    %cst_65 = arith.constant 0.000000e+00 : f32
    %61 = vector.broadcast %cst_65 : f32 to vector<2x1x32xf32>
    %c0_66 = arith.constant 0 : index
    %c9 = arith.constant 9 : index
    %c0_67 = arith.constant 0 : index
    %62 = vector.load %arg13[%c0_66, %c9, %c0_67] : memref<2x10x32xf32, #tpu.memory_space<vmem>>, vector<2x1x32xf32>
    tpu.vector_store %arg13[%c0_66, %c9, %c0_67], %61 {strides = array<i32>} : memref<2x10x32xf32, #tpu.memory_space<vmem>>, vector<2x1x32xf32>,
    %c0_68 = arith.constant 0 : index
    %c1_69 = arith.constant 1 : index
    %c0_70 = arith.constant 0 : index
    %63 = vector.load %arg13[%c0_68, %c1_69, %c0_70] : memref<2x10x32xf32, #tpu.memory_space<vmem>>, vector<2x8x32xf32>
    tpu.vector_store %arg13[%c0_68, %c1_69, %c0_70], %58 {strides = array<i32>} : memref<2x10x32xf32, #tpu.memory_space<vmem>>, vector<2x8x32xf32>,
    %cst_71 = arith.constant 0.000000e+00 : f32
    %64 = vector.broadcast %cst_71 : f32 to vector<16x32xf32>
    %c0_72 = arith.constant 0 : index
    %c0_73 = arith.constant 0 : index
    %c0_74 = arith.constant 0 : index
    %65 = vector.load %arg13[%c0_72, %c0_73, %c0_74] : memref<2x10x32xf32, #tpu.memory_space<vmem>>, vector<2x8x32xf32>
    %66 = arith.truncf %65 : vector<2x8x32xf32> to vector<2x8x32xbf16>
    %67 = vector.shape_cast %66 : vector<2x8x32xbf16> to vector<16x32xbf16>
    %c0_75 = arith.constant 0 : index
    %c0_76 = arith.constant 0 : index
    %c0_77 = arith.constant 0 : index
    %68 = vector.load %arg5[%c0_75, %c0_76, %c0_77] : memref<3x32x32xbf16, #tpu.memory_space<vmem>>, vector<1x32x32xbf16>
    %69 = vector.shape_cast %68 : vector<1x32x32xbf16> to vector<32x32xbf16>
    %cst_78 = arith.constant dense<0.000000e+00> : vector<16x32xf32>
    %70 = tpu.matmul %67, %69, %cst_78 {dimension_numbers = #tpu.dot_dimension_numbers<[1], [0], [0], [1], [0, 0, 1, 1], [], []>} : vector<16x32xbf16>, vector<32x32xbf16>, vector<16x32xf32> -> vector<16x32xf32>
    %71 = arith.addf %64, %70 : vector<16x32xf32>
    %c0_79 = arith.constant 0 : index
    %c1_80 = arith.constant 1 : index
    %c0_81 = arith.constant 0 : index
    %72 = vector.load %arg13[%c0_79, %c1_80, %c0_81] : memref<2x10x32xf32, #tpu.memory_space<vmem>>, vector<2x8x32xf32>
    %73 = arith.truncf %72 : vector<2x8x32xf32> to vector<2x8x32xbf16>
    %74 = vector.shape_cast %73 : vector<2x8x32xbf16> to vector<16x32xbf16>
    %c1_82 = arith.constant 1 : index
    %c0_83 = arith.constant 0 : index
    %c0_84 = arith.constant 0 : index
    %75 = vector.load %arg5[%c1_82, %c0_83, %c0_84] : memref<3x32x32xbf16, #tpu.memory_space<vmem>>, vector<1x32x32xbf16>
    %76 = vector.shape_cast %75 : vector<1x32x32xbf16> to vector<32x32xbf16>
    %cst_85 = arith.constant dense<0.000000e+00> : vector<16x32xf32>
    %77 = tpu.matmul %74, %76, %cst_85 {dimension_numbers = #tpu.dot_dimension_numbers<[1], [0], [0], [1], [0, 0, 1, 1], [], []>} : vector<16x32xbf16>, vector<32x32xbf16>, vector<16x32xf32> -> vector<16x32xf32>
    %78 = arith.addf %71, %77 : vector<16x32xf32>
    %c0_86 = arith.constant 0 : index
    %c2_87 = arith.constant 2 : index
    %c0_88 = arith.constant 0 : index
    %79 = vector.load %arg13[%c0_86, %c2_87, %c0_88] : memref<2x10x32xf32, #tpu.memory_space<vmem>>, vector<2x8x32xf32>
    %80 = arith.truncf %79 : vector<2x8x32xf32> to vector<2x8x32xbf16>
    %81 = vector.shape_cast %80 : vector<2x8x32xbf16> to vector<16x32xbf16>
    %c2_89 = arith.constant 2 : index
    %c0_90 = arith.constant 0 : index
    %c0_91 = arith.constant 0 : index
    %82 = vector.load %arg5[%c2_89, %c0_90, %c0_91] : memref<3x32x32xbf16, #tpu.memory_space<vmem>>, vector<1x32x32xbf16>
    %83 = vector.shape_cast %82 : vector<1x32x32xbf16> to vector<32x32xbf16>
    %cst_92 = arith.constant dense<0.000000e+00> : vector<16x32xf32>
    %84 = tpu.matmul %81, %83, %cst_92 {dimension_numbers = #tpu.dot_dimension_numbers<[1], [0], [0], [1], [0, 0, 1, 1], [], []>} : vector<16x32xbf16>, vector<32x32xbf16>, vector<16x32xf32> -> vector<16x32xf32>
    %85 = arith.addf %78, %84 : vector<16x32xf32>
    %c0_93 = arith.constant 0 : index
    %c0_94 = arith.constant 0 : index
    %86 = vector.load %arg6[%c0_93, %c0_94] : memref<1x32xf32, #tpu.memory_space<vmem>>, vector<1x32xf32>
    %87 = vector.broadcast %86 : vector<1x32xf32> to vector<16x32xf32>
    %88 = arith.addf %85, %87 : vector<16x32xf32>
    %89 = vector.shape_cast %88 : vector<16x32xf32> to vector<2x8x32xf32>
    %cst_95 = arith.constant 0.000000e+00 : f32
    %90 = vector.broadcast %cst_95 : f32 to vector<2x8x32xf32>
    %91 = arith.maximumf %89, %90 : vector<2x8x32xf32>
    %cst_96 = arith.constant 0.000000e+00 : f32
    %92 = vector.broadcast %cst_96 : f32 to vector<2x1x32xf32>
    %c0_97 = arith.constant 0 : index
    %c0_98 = arith.constant 0 : index
    %c0_99 = arith.constant 0 : index
    %93 = vector.load %arg13[%c0_97, %c0_98, %c0_99] : memref<2x10x32xf32, #tpu.memory_space<vmem>>, vector<2x1x32xf32>
    tpu.vector_store %arg13[%c0_97, %c0_98, %c0_99], %92 {strides = array<i32>} : memref<2x10x32xf32, #tpu.memory_space<vmem>>, vector<2x1x32xf32>,
    %cst_100 = arith.constant 0.000000e+00 : f32
    %94 = vector.broadcast %cst_100 : f32 to vector<2x1x32xf32>
    %c0_101 = arith.constant 0 : index
    %c9_102 = arith.constant 9 : index
    %c0_103 = arith.constant 0 : index
    %95 = vector.load %arg13[%c0_101, %c9_102, %c0_103] : memref<2x10x32xf32, #tpu.memory_space<vmem>>, vector<2x1x32xf32>
    tpu.vector_store %arg13[%c0_101, %c9_102, %c0_103], %94 {strides = array<i32>} : memref<2x10x32xf32, #tpu.memory_space<vmem>>, vector<2x1x32xf32>,
    %c0_104 = arith.constant 0 : index
    %c1_105 = arith.constant 1 : index
    %c0_106 = arith.constant 0 : index
    %96 = vector.load %arg13[%c0_104, %c1_105, %c0_106] : memref<2x10x32xf32, #tpu.memory_space<vmem>>, vector<2x8x32xf32>
    tpu.vector_store %arg13[%c0_104, %c1_105, %c0_106], %91 {strides = array<i32>} : memref<2x10x32xf32, #tpu.memory_space<vmem>>, vector<2x8x32xf32>,
    %cst_107 = arith.constant 0.000000e+00 : f32
    %97 = vector.broadcast %cst_107 : f32 to vector<16x32xf32>
    %c0_108 = arith.constant 0 : index
    %c0_109 = arith.constant 0 : index
    %c0_110 = arith.constant 0 : index
    %98 = vector.load %arg13[%c0_108, %c0_109, %c0_110] : memref<2x10x32xf32, #tpu.memory_space<vmem>>, vector<2x8x32xf32>
    %99 = arith.truncf %98 : vector<2x8x32xf32> to vector<2x8x32xbf16>
    %100 = vector.shape_cast %99 : vector<2x8x32xbf16> to vector<16x32xbf16>
    %c0_111 = arith.constant 0 : index
    %c0_112 = arith.constant 0 : index
    %c0_113 = arith.constant 0 : index
    %101 = vector.load %arg7[%c0_111, %c0_112, %c0_113] : memref<3x32x32xbf16, #tpu.memory_space<vmem>>, vector<1x32x32xbf16>
    %102 = vector.shape_cast %101 : vector<1x32x32xbf16> to vector<32x32xbf16>
    %cst_114 = arith.constant dense<0.000000e+00> : vector<16x32xf32>
    %103 = tpu.matmul %100, %102, %cst_114 {dimension_numbers = #tpu.dot_dimension_numbers<[1], [0], [0], [1], [0, 0, 1, 1], [], []>} : vector<16x32xbf16>, vector<32x32xbf16>, vector<16x32xf32> -> vector<16x32xf32>
    %104 = arith.addf %97, %103 : vector<16x32xf32>
    %c0_115 = arith.constant 0 : index
    %c1_116 = arith.constant 1 : index
    %c0_117 = arith.constant 0 : index
    %105 = vector.load %arg13[%c0_115, %c1_116, %c0_117] : memref<2x10x32xf32, #tpu.memory_space<vmem>>, vector<2x8x32xf32>
    %106 = arith.truncf %105 : vector<2x8x32xf32> to vector<2x8x32xbf16>
    %107 = vector.shape_cast %106 : vector<2x8x32xbf16> to vector<16x32xbf16>
    %c1_118 = arith.constant 1 : index
    %c0_119 = arith.constant 0 : index
    %c0_120 = arith.constant 0 : index
    %108 = vector.load %arg7[%c1_118, %c0_119, %c0_120] : memref<3x32x32xbf16, #tpu.memory_space<vmem>>, vector<1x32x32xbf16>
    %109 = vector.shape_cast %108 : vector<1x32x32xbf16> to vector<32x32xbf16>
    %cst_121 = arith.constant dense<0.000000e+00> : vector<16x32xf32>
    %110 = tpu.matmul %107, %109, %cst_121 {dimension_numbers = #tpu.dot_dimension_numbers<[1], [0], [0], [1], [0, 0, 1, 1], [], []>} : vector<16x32xbf16>, vector<32x32xbf16>, vector<16x32xf32> -> vector<16x32xf32>
    %111 = arith.addf %104, %110 : vector<16x32xf32>
    %c0_122 = arith.constant 0 : index
    %c2_123 = arith.constant 2 : index
    %c0_124 = arith.constant 0 : index
    %112 = vector.load %arg13[%c0_122, %c2_123, %c0_124] : memref<2x10x32xf32, #tpu.memory_space<vmem>>, vector<2x8x32xf32>
    %113 = arith.truncf %112 : vector<2x8x32xf32> to vector<2x8x32xbf16>
    %114 = vector.shape_cast %113 : vector<2x8x32xbf16> to vector<16x32xbf16>
    %c2_125 = arith.constant 2 : index
    %c0_126 = arith.constant 0 : index
    %c0_127 = arith.constant 0 : index
    %115 = vector.load %arg7[%c2_125, %c0_126, %c0_127] : memref<3x32x32xbf16, #tpu.memory_space<vmem>>, vector<1x32x32xbf16>
    %116 = vector.shape_cast %115 : vector<1x32x32xbf16> to vector<32x32xbf16>
    %cst_128 = arith.constant dense<0.000000e+00> : vector<16x32xf32>
    %117 = tpu.matmul %114, %116, %cst_128 {dimension_numbers = #tpu.dot_dimension_numbers<[1], [0], [0], [1], [0, 0, 1, 1], [], []>} : vector<16x32xbf16>, vector<32x32xbf16>, vector<16x32xf32> -> vector<16x32xf32>
    %118 = arith.addf %111, %117 : vector<16x32xf32>
    %c0_129 = arith.constant 0 : index
    %c0_130 = arith.constant 0 : index
    %119 = vector.load %arg8[%c0_129, %c0_130] : memref<1x32xf32, #tpu.memory_space<vmem>>, vector<1x32xf32>
    %120 = vector.broadcast %119 : vector<1x32xf32> to vector<16x32xf32>
    %121 = arith.addf %118, %120 : vector<16x32xf32>
    %122 = vector.shape_cast %121 : vector<16x32xf32> to vector<2x8x32xf32>
    %123 = arith.addf %122, %58 : vector<2x8x32xf32>
    %cst_131 = arith.constant 0.000000e+00 : f32
    %124 = vector.broadcast %cst_131 : f32 to vector<2x8x32xf32>
    %125 = arith.maximumf %123, %124 : vector<2x8x32xf32>
    %cst_132 = arith.constant dense<0.000000e+00> : vector<2x32xf32>
    %126 = vector.multi_reduction <add>, %125, %cst_132 [1] : vector<2x8x32xf32> to vector<2x32xf32>
    %cst_133 = arith.constant 8.000000e+00 : f32
    %127 = vector.broadcast %cst_133 : f32 to vector<2x32xf32>
    %128 = arith.divf %126, %127 : vector<2x32xf32>
    %c0_134 = arith.constant 0 : index
    %c0_135 = arith.constant 0 : index
    %129 = vector.load %arg9[%c0_134, %c0_135] : memref<32x10xf32, #tpu.memory_space<vmem>>, vector<32x10xf32>
    %cst_136 = arith.constant dense<0.000000e+00> : vector<2x10xf32>
    %130 = tpu.matmul %128, %129, %cst_136 {dimension_numbers = #tpu.dot_dimension_numbers<[1], [0], [0], [1], [0, 0, 1, 1], [], []>} : vector<2x32xf32>, vector<32x10xf32>, vector<2x10xf32> -> vector<2x10xf32>
    %c0_137 = arith.constant 0 : index
    %c0_138 = arith.constant 0 : index
    %131 = vector.load %arg10[%c0_137, %c0_138] : memref<1x10xf32, #tpu.memory_space<vmem>>, vector<1x10xf32>
    %132 = vector.broadcast %131 : vector<1x10xf32> to vector<2x10xf32>
    %133 = arith.addf %130, %132 : vector<2x10xf32>
    %c0_139 = arith.constant 0 : index
    %c0_140 = arith.constant 0 : index
    %134 = vector.load %arg11[%c0_139, %c0_140] : memref<2x10xf32, #tpu.memory_space<vmem>>, vector<2x10xf32>
    tpu.vector_store %arg11[%c0_139, %c0_140], %133 {strides = array<i32>} : memref<2x10xf32, #tpu.memory_space<vmem>>, vector<2x10xf32>,
    return
  }
  func.func @transform_0(%arg0: i32) -> (i32, i32, i32) {
    %c0_i32 = arith.constant 0 : i32
    %c0_i32_0 = arith.constant 0 : i32
    %c0_i32_1 = arith.constant 0 : i32
    return %arg0, %c0_i32, %c0_i32_0 : i32, i32, i32
  }
  func.func @transform_1(%arg0: i32) -> (i32, i32, i32) {
    %c0_i32 = arith.constant 0 : i32
    %c0_i32_0 = arith.constant 0 : i32
    %c0_i32_1 = arith.constant 0 : i32
    return %arg0, %c0_i32, %c0_i32_0 : i32, i32, i32
  }
  func.func @transform_2(%arg0: i32) -> (i32, i32, i32) {
    %c0_i32 = arith.constant 0 : i32
    %c0_i32_0 = arith.constant 0 : i32
    %c0_i32_1 = arith.constant 0 : i32
    %c0_i32_2 = arith.constant 0 : i32
    return %c0_i32, %c0_i32_0, %c0_i32_1 : i32, i32, i32
  }
  func.func @transform_3(%arg0: i32) -> (i32, i32) {
    %c0_i32 = arith.constant 0 : i32
    %c0_i32_0 = arith.constant 0 : i32
    %c0_i32_1 = arith.constant 0 : i32
    return %c0_i32, %c0_i32_0 : i32, i32
  }
  func.func @transform_4(%arg0: i32) -> (i32, i32, i32) {
    %c0_i32 = arith.constant 0 : i32
    %c0_i32_0 = arith.constant 0 : i32
    %c0_i32_1 = arith.constant 0 : i32
    %c0_i32_2 = arith.constant 0 : i32
    return %c0_i32, %c0_i32_0, %c0_i32_1 : i32, i32, i32
  }
  func.func @transform_5(%arg0: i32) -> (i32, i32) {
    %c0_i32 = arith.constant 0 : i32
    %c0_i32_0 = arith.constant 0 : i32
    %c0_i32_1 = arith.constant 0 : i32
    return %c0_i32, %c0_i32_0 : i32, i32
  }
  func.func @transform_6(%arg0: i32) -> (i32, i32, i32) {
    %c0_i32 = arith.constant 0 : i32
    %c0_i32_0 = arith.constant 0 : i32
    %c0_i32_1 = arith.constant 0 : i32
    %c0_i32_2 = arith.constant 0 : i32
    return %c0_i32, %c0_i32_0, %c0_i32_1 : i32, i32, i32
  }
  func.func @transform_7(%arg0: i32) -> (i32, i32) {
    %c0_i32 = arith.constant 0 : i32
    %c0_i32_0 = arith.constant 0 : i32
    %c0_i32_1 = arith.constant 0 : i32
    return %c0_i32, %c0_i32_0 : i32, i32
  }
  func.func @transform_8(%arg0: i32) -> (i32, i32) {
    %c0_i32 = arith.constant 0 : i32
    %c0_i32_0 = arith.constant 0 : i32
    %c0_i32_1 = arith.constant 0 : i32
    return %c0_i32, %c0_i32_0 : i32, i32
  }
  func.func @transform_9(%arg0: i32) -> (i32, i32) {
    %c0_i32 = arith.constant 0 : i32
    %c0_i32_0 = arith.constant 0 : i32
    %c0_i32_1 = arith.constant 0 : i32
    return %c0_i32, %c0_i32_0 : i32, i32
  }
  func.func @transform_10(%arg0: i32) -> (i32, i32) {
    %c0_i32 = arith.constant 0 : i32
    %c0_i32_0 = arith.constant 0 : i32
    return %arg0, %c0_i32 : i32, i32
  }
}

</mosaic_0001>

<llo_original>
// kernel: resnet_like_1d_forward.1
$region0: #{resnet_like_1d_forward.1}
  #allocation0 [shape = 'u32[]', space=smem, size = 0x4, offset = 0x4, fixed_abs, tag = 'smem constant byte address 0x4 - core index']
  #allocation1 [shape = 'u32[144,128]{1,0:T(1,128)}', space=vmem, size = 0x12000, scoped, tag = 'internal scratch']
  #allocation2 [shape = 'f32[32,32]{1,0:T(8,128)}', space=vmem, size = 0x4000, scoped, tag = 'scratch operand']
  #allocation3 [shape = 'f32[2,10,32]{2,1,0:T(8,128)}', space=vmem, size = 0x4000, scoped, tag = 'scratch operand']
  %s0 = inlined_call_operand.vmem [shape: bf16[2,19,16], index: 0, kind: input, shape index: {}]
  %s1 = inlined_call_operand.vmem [shape: bf16[2,19,16], index: 1, kind: input, shape index: {}]
  %s2 = inlined_call_operand.vmem [shape: bf16[7,16,32], index: 2, kind: input, shape index: {}]
  %s3 = inlined_call_operand.vmem [shape: f32[1,32], index: 3, kind: input, shape index: {}]
  %s4 = inlined_call_operand.vmem [shape: bf16[3,32,32], index: 4, kind: input, shape index: {}]
  %s5 = inlined_call_operand.vmem [shape: f32[1,32], index: 5, kind: input, shape index: {}]
  %s6 = inlined_call_operand.vmem [shape: bf16[3,32,32], index: 6, kind: input, shape index: {}]
  %s7 = inlined_call_operand.vmem [shape: f32[1,32], index: 7, kind: input, shape index: {}]
  %s8 = inlined_call_operand.vmem [shape: f32[32,10], index: 8, kind: input, shape index: {}]
  %s9 = inlined_call_operand.vmem [shape: f32[1,10], index: 9, kind: input, shape index: {}]
  %s10 = inlined_call_operand.hbm [shape: f32[2,10], index: 10, kind: output, shape index: {}]
  %s11 = sld [smem:[#allocation0]]
  $region50: #{resnet_like_1d_forward.1} parent=0
    _
  %s13 = ssub.s32 1, %s11
  %s14 = scalar_select 0, %s13, %s11
  $region1: #{resnet_like_1d_forward.1} parent=0
    #allocation4 [shape = 'u8[1024]{0}', space=vmem, size = 0x400, scoped, tag = 'output window, operand 0, single buffered']
    #allocation5 [shape = 's32[1]{0}', space=sflag, size = 0x4, scoped, tag = 'scoped memory for resnet_like_1d_forward.1']
    %15 = vsyncpa [#allocation5], 0
    // Predicated region
    $region2: #{resnet_like_1d_forward.1} parent=1 // pred_check
      _
    $region3: #{resnet_like_1d_forward.1} parent=1 // pred_check_branch
      %17 = sbr.rel (0) target = $region5
    $region4: #{resnet_like_1d_forward.1} parent=1 // pred_region
      _
    $region5: #{resnet_like_1d_forward.1} parent=1 // pred_fallthru
      _
    // Predicated region
    $region6: #{resnet_like_1d_forward.1} parent=1 // pred_check
      _
    $region7: #{resnet_like_1d_forward.1} parent=1 // pred_check_branch
      %19 = sbr.rel (0) target = $region9
    $region8: #{resnet_like_1d_forward.1} parent=1 // pred_region
      _
    $region9: #{resnet_like_1d_forward.1} parent=1 // pred_fallthru
      _
    // Predicated region
    $region10: #{resnet_like_1d_forward.1} parent=1 // pred_check
      _
    $region11: #{resnet_like_1d_forward.1} parent=1 // pred_check_branch
      %21 = sbr.rel (0) target = $region13
    $region12: #{resnet_like_1d_forward.1} parent=1 // pred_region
      _
    $region13: #{resnet_like_1d_forward.1} parent=1 // pred_fallthru
      _
    // Predicated region
    $region14: #{resnet_like_1d_forward.1} parent=1 // pred_check
      _
    $region15: #{resnet_like_1d_forward.1} parent=1 // pred_check_branch
      %23 = sbr.rel (0) target = $region17
    $region16: #{resnet_like_1d_forward.1} parent=1 // pred_region
      _
    $region17: #{resnet_like_1d_forward.1} parent=1 // pred_fallthru
      _
    // Predicated region
    $region18: #{resnet_like_1d_forward.1} parent=1 // pred_check
      _
    $region19: #{resnet_like_1d_forward.1} parent=1 // pred_check_branch
      %25 = sbr.rel (0) target = $region21
    $region20: #{resnet_like_1d_forward.1} parent=1 // pred_region
      _
    $region21: #{resnet_like_1d_forward.1} parent=1 // pred_fallthru
      _
    // Predicated region
    $region22: #{resnet_like_1d_forward.1} parent=1 // pred_check
      _
    $region23: #{resnet_like_1d_forward.1} parent=1 // pred_check_branch
      %27 = sbr.rel (0) target = $region25
    $region24: #{resnet_like_1d_forward.1} parent=1 // pred_region
      _
    $region25: #{resnet_like_1d_forward.1} parent=1 // pred_fallthru
      _
    // Predicated region
    $region26: #{resnet_like_1d_forward.1} parent=1 // pred_check
      _
    $region27: #{resnet_like_1d_forward.1} parent=1 // pred_check_branch
      %29 = sbr.rel (0) target = $region29
    $region28: #{resnet_like_1d_forward.1} parent=1 // pred_region
      _
    $region29: #{resnet_like_1d_forward.1} parent=1 // pred_fallthru
      _
    // Predicated region
    $region30: #{resnet_like_1d_forward.1} parent=1 // pred_check
      _
    $region31: #{resnet_like_1d_forward.1} parent=1 // pred_check_branch
      %31 = sbr.rel (0) target = $region33
    $region32: #{resnet_like_1d_forward.1} parent=1 // pred_region
      _
    $region33: #{resnet_like_1d_forward.1} parent=1 // pred_fallthru
      _
    // Predicated region
    $region34: #{resnet_like_1d_forward.1} parent=1 // pred_check
      _
    $region35: #{resnet_like_1d_forward.1} parent=1 // pred_check_branch
      %33 = sbr.rel (0) target = $region37
    $region36: #{resnet_like_1d_forward.1} parent=1 // pred_region
      _
    $region37: #{resnet_like_1d_forward.1} parent=1 // pred_fallthru
      _
    // Predicated region
    $region38: #{resnet_like_1d_forward.1} parent=1 // pred_check
      _
    $region39: #{resnet_like_1d_forward.1} parent=1 // pred_check_branch
      %35 = sbr.rel (0) target = $region41
    $region40: #{resnet_like_1d_forward.1} parent=1 // pred_region
      _
    $region41: #{resnet_like_1d_forward.1} parent=1 // pred_fallthru
      _
    %v37 = vld [vmem:[%s0] sm:$0xf]
    %v38 = vld [vmem:[%s0 + $0x4] sm:$0xf]
    %v39 = vld [vmem:[%s0 + $0xc] sm:$0xf]
    %v40 = vld [vmem:[%s0 + $0x10] sm:$0xf]
    %v41 = vld [vmem:[%s2] sm:$0xf]
    %v42 = vld [vmem:[%s2 + $0x4] sm:$0xf]
    %v43 = vld [vmem:[%s1] sm:$0xf]
    %v44 = vld [vmem:[%s1 + $0x4] sm:$0xf]
    %v45 = vld [vmem:[%s1 + $0xc] sm:$0xf]
    %v46 = vld [vmem:[%s1 + $0x10] sm:$0xf]
    %s47 = scalar_lea.vmem %s2, 8
    %v48 = vld [vmem:[%s47] sm:$0xf]
    %v49 = vld [vmem:[%s47 + $0x4] sm:$0xf]
    %v54 = vunpack.c.l.b16 %v43
    %v55 = vunpack.c.l.b16 %v44
    %v56 = vunpack.c.l.b16 %v45
    %v57 = vunpack.c.l.b16 %v46
    %v58 = vpack.c.b16 %v55, %v54
    %v59 = vpack.c.b16 %v57, %v56
    %v62 = vunpack.c.l.b16 %v48
    %v63 = vunpack.c.l.b16 %v49
    %v64 = vpack.c.b16 %v63, %v62
    %vm66 = vcmask 130048
    %v68 = vsel %vm66, %v58, 0
    %v71 = vsel %vm66, %v59, 0
    %73 = vmatprep.subr.bf16.mxu0 0
    %74 = vmatpush1.bf16.msra.mxu0 %v64
    %75 = vmatprep.subr.bf16.mxu0 0
    %76 = vmatpush1.bf16.msra.mxu0 0
    %77 = vmatprep.subr.bf16.mxu0 0
    %78 = vmatpush1.bf16.msra.mxu0 0
    %79 = vmatprep.subr.bf16.mxu0 0
    %80 = vmatpush1.bf16.msra.mxu0 0
    %81 = vmatprep.subr.bf16.mxu0 0
    %82 = vmatpush1.bf16.msra.mxu0 0
    %83 = vmatprep.subr.bf16.mxu0 0
    %84 = vmatpush1.bf16.msra.mxu0 0
    %85 = vmatprep.subr.bf16.mxu0 0
    %86 = vmatpush1.bf16.msra.mxu0 0
    %87 = vmatprep.subr.bf16.mxu0 0
    %88 = vmatpush1.bf16.msra.mxu0 0
    %89 = vmatprep.subr.bf16.mxu0 0
    %90 = vmatpush1.bf16.msra.mxu0 0
    %91 = vmatprep.subr.bf16.mxu0 0
    %92 = vmatpush1.bf16.msra.mxu0 0
    %93 = vmatprep.subr.bf16.mxu0 0
    %94 = vmatpush1.bf16.msra.mxu0 0
    %95 = vmatprep.subr.bf16.mxu0 0
    %96 = vmatpush1.bf16.msra.mxu0 0
    %97 = vmatprep.subr.bf16.mxu0 0
    %98 = vmatpush1.bf16.msra.mxu0 0
    %99 = vmatprep.subr.bf16.mxu0 0
    %100 = vmatpush1.bf16.msra.mxu0 0
    %101 = vmatprep.subr.bf16.mxu0 0
    %102 = vmatpush1.bf16.msra.mxu0 0
    %103 = vmatprep.subr.bf16.mxu0 0
    %104 = vmatpush1.bf16.msra.mxu0 0
    %105 = vmatprep.mubr.bf16.mxu0 0
    %106 = vmatmul.mubr.bf16.gmra.mrb[0].mxu0 %v68
    %v107 = vpop.f32.mrb[0].mxu0
    %v108 = vadd.f32 0.0, %v107
    %v109 = vpop.f32.mrb[0].mxu0
    %v110 = vpop.f32.mrb[0].mxu0
    %v111 = vadd.f32 0.0, %v110
    %v112 = vpop.f32.mrb[0].mxu0
    %113 = vmatprep.mubr.bf16.mxu0 0
    %114 = vmatmul.mubr.bf16.gmra.mrb[0].mxu0 %v71
    %v115 = vpop.f32.mrb[0].mxu0
    %v116 = vadd.f32 0.0, %v115
    %v117 = vpop.f32.mrb[0].mxu0
    %v118 = vpop.f32.mrb[0].mxu0
    %v119 = vadd.f32 0.0, %v118
    %v120 = vpop.f32.mrb[0].mxu0
    %121 = vdwg.mxu0
    %v126 = vunpack.c.l.b16 %v37
    %v127 = vunpack.c.l.b16 %v38
    %v128 = vunpack.c.l.b16 %v39
    %v129 = vunpack.c.l.b16 %v40
    %v130 = vpack.c.b16 %v127, %v126
    %v131 = vpack.c.b16 %v129, %v128
    %v134 = vunpack.c.l.b16 %v41
    %v135 = vunpack.c.l.b16 %v42
    %v136 = vpack.c.b16 %v135, %v134
    %v139 = vsel %vm66, %v130, 0
    %v142 = vsel %vm66, %v131, 0
    %144 = vmatprep.subr.bf16.mxu0 0
    %145 = vmatpush1.bf16.msra.mxu0 %v136
    %146 = vmatprep.subr.bf16.mxu0 0
    %147 = vmatpush1.bf16.msra.mxu0 0
    %148 = vmatprep.subr.bf16.mxu0 0
    %149 = vmatpush1.bf16.msra.mxu0 0
    %150 = vmatprep.subr.bf16.mxu0 0
    %151 = vmatpush1.bf16.msra.mxu0 0
    %152 = vmatprep.subr.bf16.mxu0 0
    %153 = vmatpush1.bf16.msra.mxu0 0
    %154 = vmatprep.subr.bf16.mxu0 0
    %155 = vmatpush1.bf16.msra.mxu0 0
    %156 = vmatprep.subr.bf16.mxu0 0
    %157 = vmatpush1.bf16.msra.mxu0 0
    %158 = vmatprep.subr.bf16.mxu0 0
    %159 = vmatpush1.bf16.msra.mxu0 0
    %160 = vmatprep.subr.bf16.mxu0 0
    %161 = vmatpush1.bf16.msra.mxu0 0
    %162 = vmatprep.subr.bf16.mxu0 0
    %163 = vmatpush1.bf16.msra.mxu0 0
    %164 = vmatprep.subr.bf16.mxu0 0
    %165 = vmatpush1.bf16.msra.mxu0 0
    %166 = vmatprep.subr.bf16.mxu0 0
    %167 = vmatpush1.bf16.msra.mxu0 0
    %168 = vmatprep.subr.bf16.mxu0 0
    %169 = vmatpush1.bf16.msra.mxu0 0
    %170 = vmatprep.subr.bf16.mxu0 0
    %171 = vmatpush1.bf16.msra.mxu0 0
    %172 = vmatprep.subr.bf16.mxu0 0
    %173 = vmatpush1.bf16.msra.mxu0 0
    %174 = vmatprep.subr.bf16.mxu0 0
    %175 = vmatpush1.bf16.msra.mxu0 0
    %176 = vmatprep.mubr.bf16.mxu0 0
    %177 = vmatmul.mubr.bf16.gmra.mrb[0].mxu0 %v139
    %v178 = vpop.f32.mrb[0].mxu0
    %v179 = vadd.f32 %v108, %v178
    %v180 = vpop.f32.mrb[0].mxu0
    %v181 = vpop.f32.mrb[0].mxu0
    %v182 = vadd.f32 %v111, %v181
    %v183 = vpop.f32.mrb[0].mxu0
    %184 = vmatprep.mubr.bf16.mxu0 0
    %185 = vmatmul.mubr.bf16.gmra.mrb[0].mxu0 %v142
    %v186 = vpop.f32.mrb[0].mxu0
    %v187 = vadd.f32 %v116, %v186
    %v188 = vpop.f32.mrb[0].mxu0
    %v189 = vpop.f32.mrb[0].mxu0
    %v190 = vadd.f32 %v119, %v189
    %v191 = vpop.f32.mrb[0].mxu0
    %192 = vdwg.mxu0
    %v193 = vld [vmem:[%s0] sm:$0xf]
    %v194 = vld [vmem:[%s0 + $0x4] sm:$0xf]
    %v195 = vld [vmem:[%s0 + $0x8] sm:$0x1]
    %v196 = vld [vmem:[%s0 + $0xc] sm:$0xf]
    %v197 = vld [vmem:[%s0 + $0x10] sm:$0xf]
    %v198 = vld [vmem:[%s0 + $0x14] sm:$0x1]
    %vm199 = vsmask.f32 3328
    %vm200 = vsmask.f32 7440
    %vm201 = vmor %vm199, %vm200
    %v203 = vshrl.u32 %v193, 16
    %v205 = vrot.slane %v203, 4
    %v206 = vshll.u32 %v193, 16
    %v208 = vrot.slane %v206, 5
    %v209 = vor.u32 %v205, %v208
    %v210 = vrot.slane %v209, 4
    %v212 = vshll.u32 %v194, 16
    %v214 = vrot.slane %v212, 5
    %v215 = vsel %vm201, %v210, %v214
    %v216 = vshrl.u32 %v194, 16
    %v218 = vrot.slane %v216, 4
    %v219 = vor.u32 %v218, %v214
    %v220 = vrot.slane %v219, 4
    %v222 = vshll.u32 %v195, 16
    %v224 = vrot.slane %v222, 5
    %v225 = vsel %vm201, %v220, %v224
    %v227 = vshrl.u32 %v196, 16
    %v229 = vrot.slane %v227, 4
    %v230 = vshll.u32 %v196, 16
    %v232 = vrot.slane %v230, 5
    %v233 = vor.u32 %v229, %v232
    %v234 = vrot.slane %v233, 4
    %v236 = vshll.u32 %v197, 16
    %v238 = vrot.slane %v236, 5
    %v239 = vsel %vm201, %v234, %v238
    %v240 = vshrl.u32 %v197, 16
    %v242 = vrot.slane %v240, 4
    %v243 = vor.u32 %v242, %v238
    %v244 = vrot.slane %v243, 4
    %v246 = vshll.u32 %v198, 16
    %v248 = vrot.slane %v246, 5
    %v249 = vsel %vm201, %v244, %v248
    %s250 = scalar_lea.vmem %s2, 16
    %v251 = vld [vmem:[%s250] sm:$0xf]
    %v252 = vld [vmem:[%s250 + $0x4] sm:$0xf]
    %v253 = vunpack.c.l.b16 %v215
    %v254 = vunpack.c.l.b16 %v225
    %v255 = vunpack.c.l.b16 %v239
    %v256 = vunpack.c.l.b16 %v249
    %v257 = vpack.c.b16 %v254, %v253
    %v258 = vpack.c.b16 %v256, %v255
    %v261 = vunpack.c.l.b16 %v251
    %v262 = vunpack.c.l.b16 %v252
    %v263 = vpack.c.b16 %v262, %v261
    %v266 = vsel %vm66, %v257, 0
    %v269 = vsel %vm66, %v258, 0
    %271 = vmatprep.subr.bf16.mxu0 0
    %272 = vmatpush1.bf16.msra.mxu0 %v263
    %273 = vmatprep.subr.bf16.mxu0 0
    %274 = vmatpush1.bf16.msra.mxu0 0
    %275 = vmatprep.subr.bf16.mxu0 0
    %276 = vmatpush1.bf16.msra.mxu0 0
    %277 = vmatprep.subr.bf16.mxu0 0
    %278 = vmatpush1.bf16.msra.mxu0 0
    %279 = vmatprep.subr.bf16.mxu0 0
    %280 = vmatpush1.bf16.msra.mxu0 0
    %281 = vmatprep.subr.bf16.mxu0 0
    %282 = vmatpush1.bf16.msra.mxu0 0
    %283 = vmatprep.subr.bf16.mxu0 0
    %284 = vmatpush1.bf16.msra.mxu0 0
    %285 = vmatprep.subr.bf16.mxu0 0
    %286 = vmatpush1.bf16.msra.mxu0 0
    %287 = vmatprep.subr.bf16.mxu0 0
    %288 = vmatpush1.bf16.msra.mxu0 0
    %289 = vmatprep.subr.bf16.mxu0 0
    %290 = vmatpush1.bf16.msra.mxu0 0
    %291 = vmatprep.subr.bf16.mxu0 0
    %292 = vmatpush1.bf16.msra.mxu0 0
    %293 = vmatprep.subr.bf16.mxu0 0
    %294 = vmatpush1.bf16.msra.mxu0 0
    %295 = vmatprep.subr.bf16.mxu0 0
    %296 = vmatpush1.bf16.msra.mxu0 0
    %297 = vmatprep.subr.bf16.mxu0 0
    %298 = vmatpush1.bf16.msra.mxu0 0
    %299 = vmatprep.subr.bf16.mxu0 0
    %300 = vmatpush1.bf16.msra.mxu0 0
    %301 = vmatprep.subr.bf16.mxu0 0
    %302 = vmatpush1.bf16.msra.mxu0 0
    %303 = vmatprep.mubr.bf16.mxu0 0
    %304 = vmatmul.mubr.bf16.gmra.mrb[0].mxu0 %v266
    %v305 = vpop.f32.mrb[0].mxu0
    %v306 = vadd.f32 0.0, %v305
    %v307 = vpop.f32.mrb[0].mxu0
    %v308 = vpop.f32.mrb[0].mxu0
    %v309 = vadd.f32 0.0, %v308
    %v310 = vpop.f32.mrb[0].mxu0
    %311 = vmatprep.mubr.bf16.mxu0 0
    %312 = vmatmul.mubr.bf16.gmra.mrb[0].mxu0 %v269
    %v313 = vpop.f32.mrb[0].mxu0
    %v314 = vadd.f32 0.0, %v313
    %v315 = vpop.f32.mrb[0].mxu0
    %v316 = vpop.f32.mrb[0].mxu0
    %v317 = vadd.f32 0.0, %v316
    %v318 = vpop.f32.mrb[0].mxu0
    %319 = vdwg.mxu0
    %v320 = vadd.f32 %v179, %v306
    %v321 = vadd.f32 %v182, %v309
    %v322 = vadd.f32 %v187, %v314
    %v323 = vadd.f32 %v190, %v317
    %v324 = vld [vmem:[%s1] sm:$0xf]
    %v325 = vld [vmem:[%s1 + $0x4] sm:$0xf]
    %v326 = vld [vmem:[%s1 + $0x8] sm:$0x1]
    %v327 = vld [vmem:[%s1 + $0xc] sm:$0xf]
    %v328 = vld [vmem:[%s1 + $0x10] sm:$0xf]
    %v329 = vld [vmem:[%s1 + $0x14] sm:$0x1]
    %v331 = vshrl.u32 %v324, 16
    %v333 = vrot.slane %v331, 4
    %v334 = vshll.u32 %v324, 16
    %v336 = vrot.slane %v334, 5
    %v337 = vor.u32 %v333, %v336
    %v338 = vrot.slane %v337, 4
    %v340 = vshll.u32 %v325, 16
    %v342 = vrot.slane %v340, 5
    %v343 = vsel %vm201, %v338, %v342
    %v344 = vshrl.u32 %v325, 16
    %v346 = vrot.slane %v344, 4
    %v347 = vor.u32 %v346, %v342
    %v348 = vrot.slane %v347, 4
    %v350 = vshll.u32 %v326, 16
    %v352 = vrot.slane %v350, 5
    %v353 = vsel %vm201, %v348, %v352
    %v355 = vshrl.u32 %v327, 16
    %v357 = vrot.slane %v355, 4
    %v358 = vshll.u32 %v327, 16
    %v360 = vrot.slane %v358, 5
    %v361 = vor.u32 %v357, %v360
    %v362 = vrot.slane %v361, 4
    %v364 = vshll.u32 %v328, 16
    %v366 = vrot.slane %v364, 5
    %v367 = vsel %vm201, %v362, %v366
    %v368 = vshrl.u32 %v328, 16
    %v370 = vrot.slane %v368, 4
    %v371 = vor.u32 %v370, %v366
    %v372 = vrot.slane %v371, 4
    %v374 = vshll.u32 %v329, 16
    %v376 = vrot.slane %v374, 5
    %v377 = vsel %vm201, %v372, %v376
    %s378 = scalar_lea.vmem %s2, 24
    %v379 = vld [vmem:[%s378] sm:$0xf]
    %v380 = vld [vmem:[%s378 + $0x4] sm:$0xf]
    %v381 = vunpack.c.l.b16 %v343
    %v382 = vunpack.c.l.b16 %v353
    %v383 = vunpack.c.l.b16 %v367
    %v384 = vunpack.c.l.b16 %v377
    %v385 = vpack.c.b16 %v382, %v381
    %v386 = vpack.c.b16 %v384, %v383
    %v389 = vunpack.c.l.b16 %v379
    %v390 = vunpack.c.l.b16 %v380
    %v391 = vpack.c.b16 %v390, %v389
    %v394 = vsel %vm66, %v385, 0
    %v397 = vsel %vm66, %v386, 0
    %399 = vmatprep.subr.bf16.mxu0 0
    %400 = vmatpush1.bf16.msra.mxu0 %v391
    %401 = vmatprep.subr.bf16.mxu0 0
    %402 = vmatpush1.bf16.msra.mxu0 0
    %403 = vmatprep.subr.bf16.mxu0 0
    %404 = vmatpush1.bf16.msra.mxu0 0
    %405 = vmatprep.subr.bf16.mxu0 0
    %406 = vmatpush1.bf16.msra.mxu0 0
    %407 = vmatprep.subr.bf16.mxu0 0
    %408 = vmatpush1.bf16.msra.mxu0 0
    %409 = vmatprep.subr.bf16.mxu0 0
    %410 = vmatpush1.bf16.msra.mxu0 0
    %411 = vmatprep.subr.bf16.mxu0 0
    %412 = vmatpush1.bf16.msra.mxu0 0
    %413 = vmatprep.subr.bf16.mxu0 0
    %414 = vmatpush1.bf16.msra.mxu0 0
    %415 = vmatprep.subr.bf16.mxu0 0
    %416 = vmatpush1.bf16.msra.mxu0 0
    %417 = vmatprep.subr.bf16.mxu0 0
    %418 = vmatpush1.bf16.msra.mxu0 0
    %419 = vmatprep.subr.bf16.mxu0 0
    %420 = vmatpush1.bf16.msra.mxu0 0
    %421 = vmatprep.subr.bf16.mxu0 0
    %422 = vmatpush1.bf16.msra.mxu0 0
    %423 = vmatprep.subr.bf16.mxu0 0
    %424 = vmatpush1.bf16.msra.mxu0 0
    %425 = vmatprep.subr.bf16.mxu0 0
    %426 = vmatpush1.bf16.msra.mxu0 0
    %427 = vmatprep.subr.bf16.mxu0 0
    %428 = vmatpush1.bf16.msra.mxu0 0
    %429 = vmatprep.subr.bf16.mxu0 0
    %430 = vmatpush1.bf16.msra.mxu0 0
    %431 = vmatprep.mubr.bf16.mxu0 0
    %432 = vmatmul.mubr.bf16.gmra.mrb[0].mxu0 %v394
    %v433 = vpop.f32.mrb[0].mxu0
    %v434 = vadd.f32 0.0, %v433
    %v435 = vpop.f32.mrb[0].mxu0
    %v436 = vpop.f32.mrb[0].mxu0
    %v437 = vadd.f32 0.0, %v436
    %v438 = vpop.f32.mrb[0].mxu0
    %439 = vmatprep.mubr.bf16.mxu0 0
    %440 = vmatmul.mubr.bf16.gmra.mrb[0].mxu0 %v397
    %v441 = vpop.f32.mrb[0].mxu0
    %v442 = vadd.f32 0.0, %v441
    %v443 = vpop.f32.mrb[0].mxu0
    %v444 = vpop.f32.mrb[0].mxu0
    %v445 = vadd.f32 0.0, %v444
    %v446 = vpop.f32.mrb[0].mxu0
    %447 = vdwg.mxu0
    %v448 = vadd.f32 %v320, %v434
    %v449 = vadd.f32 %v321, %v437
    %v450 = vadd.f32 %v322, %v442
    %v451 = vadd.f32 %v323, %v445
    %v452 = vld [vmem:[%s0] sm:$0xe]
    %v453 = vld [vmem:[%s0 + $0xc] sm:$0xe]
    %vm460 = vcmask 1042432
    %vm461 = vcmask 1046532
    %vm462 = vmor %vm460, %vm461
    %v463 = vrot.slane %v452, 5
    %v464 = vrot.slane %v463, 4
    %v465 = vrot.slane %v194, 5
    %v466 = vsel %vm462, %v464, %v465
    %v467 = vrot.slane %v465, 4
    %v468 = vrot.slane %v195, 5
    %v469 = vsel %vm462, %v467, %v468
    %v470 = vrot.slane %v453, 5
    %v471 = vrot.slane %v470, 4
    %v472 = vrot.slane %v197, 5
    %v473 = vsel %vm462, %v471, %v472
    %v474 = vrot.slane %v472, 4
    %v475 = vrot.slane %v198, 5
    %v476 = vsel %vm462, %v474, %v475
    %s477 = scalar_lea.vmem %s2, 32
    %v478 = vld [vmem:[%s477] sm:$0xf]
    %v479 = vld [vmem:[%s477 + $0x4] sm:$0xf]
    %v480 = vunpack.c.l.b16 %v466
    %v481 = vunpack.c.l.b16 %v469
    %v482 = vunpack.c.l.b16 %v473
    %v483 = vunpack.c.l.b16 %v476
    %v484 = vpack.c.b16 %v481, %v480
    %v485 = vpack.c.b16 %v483, %v482
    %v488 = vunpack.c.l.b16 %v478
    %v489 = vunpack.c.l.b16 %v479
    %v490 = vpack.c.b16 %v489, %v488
    %v493 = vsel %vm66, %v484, 0
    %v496 = vsel %vm66, %v485, 0
    %498 = vmatprep.subr.bf16.mxu0 0
    %499 = vmatpush1.bf16.msra.mxu0 %v490
    %500 = vmatprep.subr.bf16.mxu0 0
    %501 = vmatpush1.bf16.msra.mxu0 0
    %502 = vmatprep.subr.bf16.mxu0 0
    %503 = vmatpush1.bf16.msra.mxu0 0
    %504 = vmatprep.subr.bf16.mxu0 0
    %505 = vmatpush1.bf16.msra.mxu0 0
    %506 = vmatprep.subr.bf16.mxu0 0
    %507 = vmatpush1.bf16.msra.mxu0 0
    %508 = vmatprep.subr.bf16.mxu0 0
    %509 = vmatpush1.bf16.msra.mxu0 0
    %510 = vmatprep.subr.bf16.mxu0 0
    %511 = vmatpush1.bf16.msra.mxu0 0
    %512 = vmatprep.subr.bf16.mxu0 0
    %513 = vmatpush1.bf16.msra.mxu0 0
    %514 = vmatprep.subr.bf16.mxu0 0
    %515 = vmatpush1.bf16.msra.mxu0 0
    %516 = vmatprep.subr.bf16.mxu0 0
    %517 = vmatpush1.bf16.msra.mxu0 0
    %518 = vmatprep.subr.bf16.mxu0 0
    %519 = vmatpush1.bf16.msra.mxu0 0
    %520 = vmatprep.subr.bf16.mxu0 0
    %521 = vmatpush1.bf16.msra.mxu0 0
    %522 = vmatprep.subr.bf16.mxu0 0
    %523 = vmatpush1.bf16.msra.mxu0 0
    %524 = vmatprep.subr.bf16.mxu0 0
    %525 = vmatpush1.bf16.msra.mxu0 0
    %526 = vmatprep.subr.bf16.mxu0 0
    %527 = vmatpush1.bf16.msra.mxu0 0
    %528 = vmatprep.subr.bf16.mxu0 0
    %529 = vmatpush1.bf16.msra.mxu0 0
    %530 = vmatprep.mubr.bf16.mxu0 0
    %531 = vmatmul.mubr.bf16.gmra.mrb[0].mxu0 %v493
    %v532 = vpop.f32.mrb[0].mxu0
    %v533 = vadd.f32 0.0, %v532
    %v534 = vpop.f32.mrb[0].mxu0
    %v535 = vpop.f32.mrb[0].mxu0
    %v536 = vadd.f32 0.0, %v535
    %v537 = vpop.f32.mrb[0].mxu0
    %538 = vmatprep.mubr.bf16.mxu0 0
    %539 = vmatmul.mubr.bf16.gmra.mrb[0].mxu0 %v496
    %v540 = vpop.f32.mrb[0].mxu0
    %v541 = vadd.f32 0.0, %v540
    %v542 = vpop.f32.mrb[0].mxu0
    %v543 = vpop.f32.mrb[0].mxu0
    %v544 = vadd.f32 0.0, %v543
    %v545 = vpop.f32.mrb[0].mxu0
    %546 = vdwg.mxu0
    %v547 = vadd.f32 %v448, %v533
    %v548 = vadd.f32 %v449, %v536
    %v549 = vadd.f32 %v450, %v541
    %v550 = vadd.f32 %v451, %v544
    %v551 = vld [vmem:[%s1] sm:$0xe]
    %v552 = vld [vmem:[%s1 + $0xc] sm:$0xe]
    %v559 = vrot.slane %v551, 5
    %v560 = vrot.slane %v559, 4
    %v561 = vrot.slane %v325, 5
    %v562 = vsel %vm462, %v560, %v561
    %v563 = vrot.slane %v561, 4
    %v564 = vrot.slane %v326, 5
    %v565 = vsel %vm462, %v563, %v564
    %v566 = vrot.slane %v552, 5
    %v567 = vrot.slane %v566, 4
    %v568 = vrot.slane %v328, 5
    %v569 = vsel %vm462, %v567, %v568
    %v570 = vrot.slane %v568, 4
    %v571 = vrot.slane %v329, 5
    %v572 = vsel %vm462, %v570, %v571
    %s573 = scalar_lea.vmem %s2, 40
    %v574 = vld [vmem:[%s573] sm:$0xf]
    %v575 = vld [vmem:[%s573 + $0x4] sm:$0xf]
    %v576 = vunpack.c.l.b16 %v562
    %v577 = vunpack.c.l.b16 %v565
    %v578 = vunpack.c.l.b16 %v569
    %v579 = vunpack.c.l.b16 %v572
    %v580 = vpack.c.b16 %v577, %v576
    %v581 = vpack.c.b16 %v579, %v578
    %v584 = vunpack.c.l.b16 %v574
    %v585 = vunpack.c.l.b16 %v575
    %v586 = vpack.c.b16 %v585, %v584
    %v589 = vsel %vm66, %v580, 0
    %v592 = vsel %vm66, %v581, 0
    %594 = vmatprep.subr.bf16.mxu0 0
    %595 = vmatpush1.bf16.msra.mxu0 %v586
    %596 = vmatprep.subr.bf16.mxu0 0
    %597 = vmatpush1.bf16.msra.mxu0 0
    %598 = vmatprep.subr.bf16.mxu0 0
    %599 = vmatpush1.bf16.msra.mxu0 0
    %600 = vmatprep.subr.bf16.mxu0 0
    %601 = vmatpush1.bf16.msra.mxu0 0
    %602 = vmatprep.subr.bf16.mxu0 0
    %603 = vmatpush1.bf16.msra.mxu0 0
    %604 = vmatprep.subr.bf16.mxu0 0
    %605 = vmatpush1.bf16.msra.mxu0 0
    %606 = vmatprep.subr.bf16.mxu0 0
    %607 = vmatpush1.bf16.msra.mxu0 0
    %608 = vmatprep.subr.bf16.mxu0 0
    %609 = vmatpush1.bf16.msra.mxu0 0
    %610 = vmatprep.subr.bf16.mxu0 0
    %611 = vmatpush1.bf16.msra.mxu0 0
    %612 = vmatprep.subr.bf16.mxu0 0
    %613 = vmatpush1.bf16.msra.mxu0 0
    %614 = vmatprep.subr.bf16.mxu0 0
    %615 = vmatpush1.bf16.msra.mxu0 0
    %616 = vmatprep.subr.bf16.mxu0 0
    %617 = vmatpush1.bf16.msra.mxu0 0
    %618 = vmatprep.subr.bf16.mxu0 0
    %619 = vmatpush1.bf16.msra.mxu0 0
    %620 = vmatprep.subr.bf16.mxu0 0
    %621 = vmatpush1.bf16.msra.mxu0 0
    %622 = vmatprep.subr.bf16.mxu0 0
    %623 = vmatpush1.bf16.msra.mxu0 0
    %624 = vmatprep.subr.bf16.mxu0 0
    %625 = vmatpush1.bf16.msra.mxu0 0
    %626 = vmatprep.mubr.bf16.mxu0 0
    %627 = vmatmul.mubr.bf16.gmra.mrb[0].mxu0 %v589
    %v628 = vpop.f32.mrb[0].mxu0
    %v629 = vadd.f32 0.0, %v628
    %v630 = vpop.f32.mrb[0].mxu0
    %v631 = vpop.f32.mrb[0].mxu0
    %v632 = vadd.f32 0.0, %v631
    %v633 = vpop.f32.mrb[0].mxu0
    %634 = vmatprep.mubr.bf16.mxu0 0
    %635 = vmatmul.mubr.bf16.gmra.mrb[0].mxu0 %v592
    %v636 = vpop.f32.mrb[0].mxu0
    %v637 = vadd.f32 0.0, %v636
    %v638 = vpop.f32.mrb[0].mxu0
    %v639 = vpop.f32.mrb[0].mxu0
    %v640 = vadd.f32 0.0, %v639
    %v641 = vpop.f32.mrb[0].mxu0
    %642 = vdwg.mxu0
    %v643 = vadd.f32 %v547, %v629
    %v644 = vadd.f32 %v548, %v632
    %v645 = vadd.f32 %v549, %v637
    %v646 = vadd.f32 %v550, %v640
    %v647 = vld [vmem:[%s0 + $0x8] sm:$0x3]
    %v648 = vld [vmem:[%s0 + $0x14] sm:$0x3]
    %vm649 = vsmask.f32 2304
    %vm650 = vsmask.f32 6416
    %vm651 = vmor %vm649, %vm650
    %v653 = vshrl.u32 %v452, 16
    %v655 = vrot.slane %v653, 5
    %v656 = vshll.u32 %v452, 16
    %v658 = vrot.slane %v656, 6
    %v659 = vor.u32 %v655, %v658
    %v660 = vrot.slane %v659, 4
    %v661 = vrot.slane %v216, 5
    %v662 = vrot.slane %v212, 6
    %v663 = vor.u32 %v661, %v662
    %v664 = vsel %vm651, %v660, %v663
    %v665 = vrot.slane %v663, 4
    %v667 = vshrl.u32 %v647, 16
    %v669 = vrot.slane %v667, 5
    %v670 = vshll.u32 %v647, 16
    %v672 = vrot.slane %v670, 6
    %v673 = vor.u32 %v669, %v672
    %v674 = vsel %vm651, %v665, %v673
    %v676 = vshrl.u32 %v453, 16
    %v678 = vrot.slane %v676, 5
    %v679 = vshll.u32 %v453, 16
    %v681 = vrot.slane %v679, 6
    %v682 = vor.u32 %v678, %v681
    %v683 = vrot.slane %v682, 4
    %v684 = vrot.slane %v240, 5
    %v685 = vrot.slane %v236, 6
    %v686 = vor.u32 %v684, %v685
    %v687 = vsel %vm651, %v683, %v686
    %v688 = vrot.slane %v686, 4
    %v690 = vshrl.u32 %v648, 16
    %v692 = vrot.slane %v690, 5
    %v693 = vshll.u32 %v648, 16
    %v695 = vrot.slane %v693, 6
    %v696 = vor.u32 %v692, %v695
    %v697 = vsel %vm651, %v688, %v696
    %s698 = scalar_lea.vmem %s2, 48
    %v699 = vld [vmem:[%s698] sm:$0xf]
    %v700 = vld [vmem:[%s698 + $0x4] sm:$0xf]
    %v701 = vunpack.c.l.b16 %v664
    %v702 = vunpack.c.l.b16 %v674
    %v703 = vunpack.c.l.b16 %v687
    %v704 = vunpack.c.l.b16 %v697
    %v705 = vpack.c.b16 %v702, %v701
    %v706 = vpack.c.b16 %v704, %v703
    %v709 = vunpack.c.l.b16 %v699
    %v710 = vunpack.c.l.b16 %v700
    %v711 = vpack.c.b16 %v710, %v709
    %v714 = vsel %vm66, %v705, 0
    %v717 = vsel %vm66, %v706, 0
    %719 = vmatprep.subr.bf16.mxu0 0
    %720 = vmatpush1.bf16.msra.mxu0 %v711
    %721 = vmatprep.subr.bf16.mxu0 0
    %722 = vmatpush1.bf16.msra.mxu0 0
    %723 = vmatprep.subr.bf16.mxu0 0
    %724 = vmatpush1.bf16.msra.mxu0 0
    %725 = vmatprep.subr.bf16.mxu0 0
    %726 = vmatpush1.bf16.msra.mxu0 0
    %727 = vmatprep.subr.bf16.mxu0 0
    %728 = vmatpush1.bf16.msra.mxu0 0
    %729 = vmatprep.subr.bf16.mxu0 0
    %730 = vmatpush1.bf16.msra.mxu0 0
    %731 = vmatprep.subr.bf16.mxu0 0
    %732 = vmatpush1.bf16.msra.mxu0 0
    %733 = vmatprep.subr.bf16.mxu0 0
    %734 = vmatpush1.bf16.msra.mxu0 0
    %735 = vmatprep.subr.bf16.mxu0 0
    %736 = vmatpush1.bf16.msra.mxu0 0
    %737 = vmatprep.subr.bf16.mxu0 0
    %738 = vmatpush1.bf16.msra.mxu0 0
    %739 = vmatprep.subr.bf16.mxu0 0
    %740 = vmatpush1.bf16.msra.mxu0 0
    %741 = vmatprep.subr.bf16.mxu0 0
    %742 = vmatpush1.bf16.msra.mxu0 0
    %743 = vmatprep.subr.bf16.mxu0 0
    %744 = vmatpush1.bf16.msra.mxu0 0
    %745 = vmatprep.subr.bf16.mxu0 0
    %746 = vmatpush1.bf16.msra.mxu0 0
    %747 = vmatprep.subr.bf16.mxu0 0
    %748 = vmatpush1.bf16.msra.mxu0 0
    %749 = vmatprep.subr.bf16.mxu0 0
    %750 = vmatpush1.bf16.msra.mxu0 0
    %751 = vmatprep.mubr.bf16.mxu0 0
    %752 = vmatmul.mubr.bf16.gmra.mrb[0].mxu0 %v714
    %v753 = vpop.f32.mrb[0].mxu0
    %v754 = vadd.f32 0.0, %v753
    %v755 = vpop.f32.mrb[0].mxu0
    %v756 = vpop.f32.mrb[0].mxu0
    %v757 = vadd.f32 0.0, %v756
    %v758 = vpop.f32.mrb[0].mxu0
    %759 = vmatprep.mubr.bf16.mxu0 0
    %760 = vmatmul.mubr.bf16.gmra.mrb[0].mxu0 %v717
    %v761 = vpop.f32.mrb[0].mxu0
    %v762 = vadd.f32 0.0, %v761
    %v763 = vpop.f32.mrb[0].mxu0
    %v764 = vpop.f32.mrb[0].mxu0
    %v765 = vadd.f32 0.0, %v764
    %v766 = vpop.f32.mrb[0].mxu0
    %767 = vdwg.mxu0
    %v768 = vadd.f32 %v643, %v754
    %v769 = vadd.f32 %v644, %v757
    %v770 = vadd.f32 %v645, %v762
    %v771 = vadd.f32 %v646, %v765
    %v772 = vld [vmem:[%s3] sm:$0x1]
    %v774 = vlaneseq
    %v775 = vshrl.u32 %v774, 7
    %v776 = vsub.s32 0, %v775
    %v777 = vrot.slane %v772, %v776
    %v779 = vadd.f32 %v768, %v777
    %v780 = vadd.f32 %v769, %v777
    %v781 = vadd.f32 %v770, %v777
    %v782 = vadd.f32 %v771, %v777
    %v783 = vmax.f32 %v779, 0.0
    %v784 = vmax.f32 %v780, 0.0
    %v785 = vmax.f32 %v781, 0.0
    %v786 = vmax.f32 %v782, 0.0
    %vm787 = vcmask 261120
    %788 = vst.msk [vmem:[#allocation2] sm:$0xff] %vm787, %v783
    %789 = vst.msk [vmem:[#allocation2 + $0x8] sm:$0xff] %vm787, %v784
    %790 = vst.msk [vmem:[#allocation2 + $0x10] sm:$0xff] %vm787, %v785
    %791 = vst.msk [vmem:[#allocation2 + $0x18] sm:$0xff] %vm787, %v786
    %v792 = vld [vmem:[#allocation2] ss:$2 sm:$0xff]
    %s793 = scalar_lea.vmem [#allocation2], 16
    %v794 = vld [vmem:[%s793] ss:$2 sm:$0xff]
    %s795 = scalar_lea.vmem [#allocation2], 1
    %v796 = vld [vmem:[%s795] ss:$2 sm:$0xff]
    %s797 = scalar_lea.vmem [#allocation2], 17
    %v798 = vld [vmem:[%s797] ss:$2 sm:$0xff]
    %vm799 = vcmask 253952
    %800 = vst.msk [vmem:[#allocation3] sm:$0x1] %vm799, -inf
    %801 = vst.msk [vmem:[#allocation3 + $0x10] sm:$0x1] %vm799, -inf
    %802 = vst.msk [vmem:[#allocation3 + $0x1] sm:$0xff] %vm787, %v796
    %803 = vst.msk [vmem:[#allocation3 + $0x11] sm:$0xff] %vm787, %v798
    %v804 = vld [vmem:[#allocation3] sm:$0xff]
    %v805 = vld [vmem:[#allocation3 + $0x10] sm:$0xff]
    %v806 = vmax.f32 %v792, %v796
    %v807 = vmax.f32 %v794, %v798
    %v808 = vmax.f32 %v806, %v804
    %v809 = vmax.f32 %v807, %v805
    %810 = vst.msk [vmem:[#allocation3] sm:$0x1] %vm799, 0.0
    %811 = vst.msk [vmem:[#allocation3 + $0x10] sm:$0x1] %vm799, 0.0
    %812 = vst.msk [vmem:[#allocation3 + $0x9] sm:$0x1] %vm799, 0.0
    %813 = vst.msk [vmem:[#allocation3 + $0x19] sm:$0x1] %vm799, 0.0
    %814 = vst.msk [vmem:[#allocation3 + $0x1] sm:$0xff] %vm787, %v808
    %815 = vst.msk [vmem:[#allocation3 + $0x11] sm:$0xff] %vm787, %v809
    %v816 = vld [vmem:[#allocation3] sm:$0xff]
    %v817 = vld [vmem:[#allocation3 + $0x10] sm:$0xff]
    %v818 = vpack.c.bf16 %v816, %v816
    %v819 = vpack.c.bf16 %v817, %v817
    %v820 = vld [vmem:[%s4] sm:$0xf]
    %v821 = vld [vmem:[%s4 + $0x4] sm:$0xf]
    %v822 = vld [vmem:[%s4 + $0x8] sm:$0xf]
    %v823 = vld [vmem:[%s4 + $0xc] sm:$0xf]
    %v824 = vld [vmem:[#allocation3 + $0x1] sm:$0xff]
    %v825 = vld [vmem:[#allocation3 + $0x11] sm:$0xff]
    %v826 = vpack.c.bf16 %v824, %v824
    %v827 = vpack.c.bf16 %v825, %v825
    %s828 = scalar_lea.vmem %s4, 16
    %v829 = vld [vmem:[%s828] sm:$0xf]
    %v830 = vld [vmem:[%s828 + $0x4] sm:$0xf]
    %v831 = vld [vmem:[%s828 + $0x8] sm:$0xf]
    %v832 = vld [vmem:[%s828 + $0xc] sm:$0xf]
    %v835 = vunpack.c.l.b16 %v826
    %v836 = vunpack.c.l.b16 %v827
    %v837 = vpack.c.b16 %v836, %v835
    %v842 = vunpack.c.l.b16 %v829
    %v843 = vunpack.c.l.b16 %v830
    %v844 = vunpack.c.l.b16 %v831
    %v845 = vunpack.c.l.b16 %v832
    %v846 = vpack.c.b16 %v843, %v842
    %v847 = vpack.c.b16 %v845, %v844
    %v851 = vsel %vm787, %v837, 0
    %853 = vmatprep.subr.bf16.mxu0 0
    %854 = vmatpush1.bf16.msra.mxu0 %v846
    %855 = vmatprep.subr.bf16.mxu0 0
    %856 = vmatpush1.bf16.msra.mxu0 %v847
    %857 = vmatprep.subr.bf16.mxu0 0
    %858 = vmatpush1.bf16.msra.mxu0 0
    %859 = vmatprep.subr.bf16.mxu0 0
    %860 = vmatpush1.bf16.msra.mxu0 0
    %861 = vmatprep.subr.bf16.mxu0 0
    %862 = vmatpush1.bf16.msra.mxu0 0
    %863 = vmatprep.subr.bf16.mxu0 0
    %864 = vmatpush1.bf16.msra.mxu0 0
    %865 = vmatprep.subr.bf16.mxu0 0
    %866 = vmatpush1.bf16.msra.mxu0 0
    %867 = vmatprep.subr.bf16.mxu0 0
    %868 = vmatpush1.bf16.msra.mxu0 0
    %869 = vmatprep.subr.bf16.mxu0 0
    %870 = vmatpush1.bf16.msra.mxu0 0
    %871 = vmatprep.subr.bf16.mxu0 0
    %872 = vmatpush1.bf16.msra.mxu0 0
    %873 = vmatprep.subr.bf16.mxu0 0
    %874 = vmatpush1.bf16.msra.mxu0 0
    %875 = vmatprep.subr.bf16.mxu0 0
    %876 = vmatpush1.bf16.msra.mxu0 0
    %877 = vmatprep.subr.bf16.mxu0 0
    %878 = vmatpush1.bf16.msra.mxu0 0
    %879 = vmatprep.subr.bf16.mxu0 0
    %880 = vmatpush1.bf16.msra.mxu0 0
    %881 = vmatprep.subr.bf16.mxu0 0
    %882 = vmatpush1.bf16.msra.mxu0 0
    %883 = vmatprep.subr.bf16.mxu0 0
    %884 = vmatpush1.bf16.msra.mxu0 0
    %885 = vmatprep.mubr.bf16.mxu0 0
    %886 = vmatmul.mubr.bf16.gmra.mrb[0].mxu0 %v851
    %v887 = vpop.f32.mrb[0].mxu0
    %v888 = vadd.f32 0.0, %v887
    %v889 = vpop.f32.mrb[0].mxu0
    %v890 = vpop.f32.mrb[0].mxu0
    %v891 = vadd.f32 0.0, %v890
    %v892 = vpop.f32.mrb[0].mxu0
    %893 = vdwg.mxu0
    %v896 = vunpack.c.l.b16 %v818
    %v897 = vunpack.c.l.b16 %v819
    %v898 = vpack.c.b16 %v897, %v896
    %v903 = vunpack.c.l.b16 %v820
    %v904 = vunpack.c.l.b16 %v821
    %v905 = vunpack.c.l.b16 %v822
    %v906 = vunpack.c.l.b16 %v823
    %v907 = vpack.c.b16 %v904, %v903
    %v908 = vpack.c.b16 %v906, %v905
    %v912 = vsel %vm787, %v898, 0
    %914 = vmatprep.subr.bf16.mxu0 0
    %915 = vmatpush1.bf16.msra.mxu0 %v907
    %916 = vmatprep.subr.bf16.mxu0 0
    %917 = vmatpush1.bf16.msra.mxu0 %v908
    %918 = vmatprep.subr.bf16.mxu0 0
    %919 = vmatpush1.bf16.msra.mxu0 0
    %920 = vmatprep.subr.bf16.mxu0 0
    %921 = vmatpush1.bf16.msra.mxu0 0
    %922 = vmatprep.subr.bf16.mxu0 0
    %923 = vmatpush1.bf16.msra.mxu0 0
    %924 = vmatprep.subr.bf16.mxu0 0
    %925 = vmatpush1.bf16.msra.mxu0 0
    %926 = vmatprep.subr.bf16.mxu0 0
    %927 = vmatpush1.bf16.msra.mxu0 0
    %928 = vmatprep.subr.bf16.mxu0 0
    %929 = vmatpush1.bf16.msra.mxu0 0
    %930 = vmatprep.subr.bf16.mxu0 0
    %931 = vmatpush1.bf16.msra.mxu0 0
    %932 = vmatprep.subr.bf16.mxu0 0
    %933 = vmatpush1.bf16.msra.mxu0 0
    %934 = vmatprep.subr.bf16.mxu0 0
    %935 = vmatpush1.bf16.msra.mxu0 0
    %936 = vmatprep.subr.bf16.mxu0 0
    %937 = vmatpush1.bf16.msra.mxu0 0
    %938 = vmatprep.subr.bf16.mxu0 0
    %939 = vmatpush1.bf16.msra.mxu0 0
    %940 = vmatprep.subr.bf16.mxu0 0
    %941 = vmatpush1.bf16.msra.mxu0 0
    %942 = vmatprep.subr.bf16.mxu0 0
    %943 = vmatpush1.bf16.msra.mxu0 0
    %944 = vmatprep.subr.bf16.mxu0 0
    %945 = vmatpush1.bf16.msra.mxu0 0
    %946 = vmatprep.mubr.bf16.mxu0 0
    %947 = vmatmul.mubr.bf16.gmra.mrb[0].mxu0 %v912
    %v948 = vpop.f32.mrb[0].mxu0
    %v949 = vadd.f32 %v888, %v948
    %v950 = vpop.f32.mrb[0].mxu0
    %v951 = vpop.f32.mrb[0].mxu0
    %v952 = vadd.f32 %v891, %v951
    %v953 = vpop.f32.mrb[0].mxu0
    %954 = vdwg.mxu0
    %v955 = vld [vmem:[#allocation3 + $0x2] sm:$0xff]
    %v956 = vld [vmem:[#allocation3 + $0x12] sm:$0xff]
    %v957 = vpack.c.bf16 %v955, %v955
    %v958 = vpack.c.bf16 %v956, %v956
    %s959 = scalar_lea.vmem %s4, 32
    %v960 = vld [vmem:[%s959] sm:$0xf]
    %v961 = vld [vmem:[%s959 + $0x4] sm:$0xf]
    %v962 = vld [vmem:[%s959 + $0x8] sm:$0xf]
    %v963 = vld [vmem:[%s959 + $0xc] sm:$0xf]
    %v966 = vunpack.c.l.b16 %v957
    %v967 = vunpack.c.l.b16 %v958
    %v968 = vpack.c.b16 %v967, %v966
    %v973 = vunpack.c.l.b16 %v960
    %v974 = vunpack.c.l.b16 %v961
    %v975 = vunpack.c.l.b16 %v962
    %v976 = vunpack.c.l.b16 %v963
    %v977 = vpack.c.b16 %v974, %v973
    %v978 = vpack.c.b16 %v976, %v975
    %v982 = vsel %vm787, %v968, 0
    %984 = vmatprep.subr.bf16.mxu0 0
    %985 = vmatpush1.bf16.msra.mxu0 %v977
    %986 = vmatprep.subr.bf16.mxu0 0
    %987 = vmatpush1.bf16.msra.mxu0 %v978
    %988 = vmatprep.subr.bf16.mxu0 0
    %989 = vmatpush1.bf16.msra.mxu0 0
    %990 = vmatprep.subr.bf16.mxu0 0
    %991 = vmatpush1.bf16.msra.mxu0 0
    %992 = vmatprep.subr.bf16.mxu0 0
    %993 = vmatpush1.bf16.msra.mxu0 0
    %994 = vmatprep.subr.bf16.mxu0 0
    %995 = vmatpush1.bf16.msra.mxu0 0
    %996 = vmatprep.subr.bf16.mxu0 0
    %997 = vmatpush1.bf16.msra.mxu0 0
    %998 = vmatprep.subr.bf16.mxu0 0
    %999 = vmatpush1.bf16.msra.mxu0 0
    %1000 = vmatprep.subr.bf16.mxu0 0
    %1001 = vmatpush1.bf16.msra.mxu0 0
    %1002 = vmatprep.subr.bf16.mxu0 0
    %1003 = vmatpush1.bf16.msra.mxu0 0
    %1004 = vmatprep.subr.bf16.mxu0 0
    %1005 = vmatpush1.bf16.msra.mxu0 0
    %1006 = vmatprep.subr.bf16.mxu0 0
    %1007 = vmatpush1.bf16.msra.mxu0 0
    %1008 = vmatprep.subr.bf16.mxu0 0
    %1009 = vmatpush1.bf16.msra.mxu0 0
    %1010 = vmatprep.subr.bf16.mxu0 0
    %1011 = vmatpush1.bf16.msra.mxu0 0
    %1012 = vmatprep.subr.bf16.mxu0 0
    %1013 = vmatpush1.bf16.msra.mxu0 0
    %1014 = vmatprep.subr.bf16.mxu0 0
    %1015 = vmatpush1.bf16.msra.mxu0 0
    %1016 = vmatprep.mubr.bf16.mxu0 0
    %1017 = vmatmul.mubr.bf16.gmra.mrb[0].mxu0 %v982
    %v1018 = vpop.f32.mrb[0].mxu0
    %v1019 = vadd.f32 0.0, %v1018
    %v1020 = vpop.f32.mrb[0].mxu0
    %v1021 = vpop.f32.mrb[0].mxu0
    %v1022 = vadd.f32 0.0, %v1021
    %v1023 = vpop.f32.mrb[0].mxu0
    %1024 = vdwg.mxu0
    %v1025 = vadd.f32 %v949, %v1019
    %v1026 = vadd.f32 %v952, %v1022
    %v1027 = vld [vmem:[%s5] sm:$0x1]
    %v1029 = vlaneseq
    %v1030 = vshrl.u32 %v1029, 7
    %v1031 = vsub.s32 0, %v1030
    %v1032 = vrot.slane %v1027, %v1031
    %v1034 = vadd.f32 %v1025, %v1032
    %v1035 = vadd.f32 %v1026, %v1032
    %v1036 = vmax.f32 %v1034, 0.0
    %v1037 = vmax.f32 %v1035, 0.0
    %1038 = vst.msk [vmem:[#allocation3] sm:$0x1] %vm799, 0.0
    %1039 = vst.msk [vmem:[#allocation3 + $0x10] sm:$0x1] %vm799, 0.0
    %1040 = vst.msk [vmem:[#allocation3 + $0x9] sm:$0x1] %vm799, 0.0
    %1041 = vst.msk [vmem:[#allocation3 + $0x19] sm:$0x1] %vm799, 0.0
    %1042 = vst.msk [vmem:[#allocation3 + $0x1] sm:$0xff] %vm787, %v1036
    %1043 = vst.msk [vmem:[#allocation3 + $0x11] sm:$0xff] %vm787, %v1037
    %v1044 = vld [vmem:[#allocation3] sm:$0xff]
    %v1045 = vld [vmem:[#allocation3 + $0x10] sm:$0xff]
    %v1046 = vpack.c.bf16 %v1044, %v1044
    %v1047 = vpack.c.bf16 %v1045, %v1045
    %v1048 = vld [vmem:[%s6] sm:$0xf]
    %v1049 = vld [vmem:[%s6 + $0x4] sm:$0xf]
    %v1050 = vld [vmem:[%s6 + $0x8] sm:$0xf]
    %v1051 = vld [vmem:[%s6 + $0xc] sm:$0xf]
    %v1052 = vld [vmem:[#allocation3 + $0x1] sm:$0xff]
    %v1053 = vld [vmem:[#allocation3 + $0x11] sm:$0xff]
    %v1054 = vpack.c.bf16 %v1052, %v1052
    %v1055 = vpack.c.bf16 %v1053, %v1053
    %s1056 = scalar_lea.vmem %s6, 16
    %v1057 = vld [vmem:[%s1056] sm:$0xf]
    %v1058 = vld [vmem:[%s1056 + $0x4] sm:$0xf]
    %v1059 = vld [vmem:[%s1056 + $0x8] sm:$0xf]
    %v1060 = vld [vmem:[%s1056 + $0xc] sm:$0xf]
    %v1063 = vunpack.c.l.b16 %v1054
    %v1064 = vunpack.c.l.b16 %v1055
    %v1065 = vpack.c.b16 %v1064, %v1063
    %v1070 = vunpack.c.l.b16 %v1057
    %v1071 = vunpack.c.l.b16 %v1058
    %v1072 = vunpack.c.l.b16 %v1059
    %v1073 = vunpack.c.l.b16 %v1060
    %v1074 = vpack.c.b16 %v1071, %v1070
    %v1075 = vpack.c.b16 %v1073, %v1072
    %v1079 = vsel %vm787, %v1065, 0
    %1081 = vmatprep.subr.bf16.mxu0 0
    %1082 = vmatpush1.bf16.msra.mxu0 %v1074
    %1083 = vmatprep.subr.bf16.mxu0 0
    %1084 = vmatpush1.bf16.msra.mxu0 %v1075
    %1085 = vmatprep.subr.bf16.mxu0 0
    %1086 = vmatpush1.bf16.msra.mxu0 0
    %1087 = vmatprep.subr.bf16.mxu0 0
    %1088 = vmatpush1.bf16.msra.mxu0 0
    %1089 = vmatprep.subr.bf16.mxu0 0
    %1090 = vmatpush1.bf16.msra.mxu0 0
    %1091 = vmatprep.subr.bf16.mxu0 0
    %1092 = vmatpush1.bf16.msra.mxu0 0
    %1093 = vmatprep.subr.bf16.mxu0 0
    %1094 = vmatpush1.bf16.msra.mxu0 0
    %1095 = vmatprep.subr.bf16.mxu0 0
    %1096 = vmatpush1.bf16.msra.mxu0 0
    %1097 = vmatprep.subr.bf16.mxu0 0
    %1098 = vmatpush1.bf16.msra.mxu0 0
    %1099 = vmatprep.subr.bf16.mxu0 0
    %1100 = vmatpush1.bf16.msra.mxu0 0
    %1101 = vmatprep.subr.bf16.mxu0 0
    %1102 = vmatpush1.bf16.msra.mxu0 0
    %1103 = vmatprep.subr.bf16.mxu0 0
    %1104 = vmatpush1.bf16.msra.mxu0 0
    %1105 = vmatprep.subr.bf16.mxu0 0
    %1106 = vmatpush1.bf16.msra.mxu0 0
    %1107 = vmatprep.subr.bf16.mxu0 0
    %1108 = vmatpush1.bf16.msra.mxu0 0
    %1109 = vmatprep.subr.bf16.mxu0 0
    %1110 = vmatpush1.bf16.msra.mxu0 0
    %1111 = vmatprep.subr.bf16.mxu0 0
    %1112 = vmatpush1.bf16.msra.mxu0 0
    %1113 = vmatprep.mubr.bf16.mxu0 0
    %1114 = vmatmul.mubr.bf16.gmra.mrb[0].mxu0 %v1079
    %v1115 = vpop.f32.mrb[0].mxu0
    %v1116 = vadd.f32 0.0, %v1115
    %v1117 = vpop.f32.mrb[0].mxu0
    %v1118 = vpop.f32.mrb[0].mxu0
    %v1119 = vadd.f32 0.0, %v1118
    %v1120 = vpop.f32.mrb[0].mxu0
    %1121 = vdwg.mxu0
    %v1124 = vunpack.c.l.b16 %v1046
    %v1125 = vunpack.c.l.b16 %v1047
    %v1126 = vpack.c.b16 %v1125, %v1124
    %v1131 = vunpack.c.l.b16 %v1048
    %v1132 = vunpack.c.l.b16 %v1049
    %v1133 = vunpack.c.l.b16 %v1050
    %v1134 = vunpack.c.l.b16 %v1051
    %v1135 = vpack.c.b16 %v1132, %v1131
    %v1136 = vpack.c.b16 %v1134, %v1133
    %v1140 = vsel %vm787, %v1126, 0
    %1142 = vmatprep.subr.bf16.mxu0 0
    %1143 = vmatpush1.bf16.msra.mxu0 %v1135
    %1144 = vmatprep.subr.bf16.mxu0 0
    %1145 = vmatpush1.bf16.msra.mxu0 %v1136
    %1146 = vmatprep.subr.bf16.mxu0 0
    %1147 = vmatpush1.bf16.msra.mxu0 0
    %1148 = vmatprep.subr.bf16.mxu0 0
    %1149 = vmatpush1.bf16.msra.mxu0 0
    %1150 = vmatprep.subr.bf16.mxu0 0
    %1151 = vmatpush1.bf16.msra.mxu0 0
    %1152 = vmatprep.subr.bf16.mxu0 0
    %1153 = vmatpush1.bf16.msra.mxu0 0
    %1154 = vmatprep.subr.bf16.mxu0 0
    %1155 = vmatpush1.bf16.msra.mxu0 0
    %1156 = vmatprep.subr.bf16.mxu0 0
    %1157 = vmatpush1.bf16.msra.mxu0 0
    %1158 = vmatprep.subr.bf16.mxu0 0
    %1159 = vmatpush1.bf16.msra.mxu0 0
    %1160 = vmatprep.subr.bf16.mxu0 0
    %1161 = vmatpush1.bf16.msra.mxu0 0
    %1162 = vmatprep.subr.bf16.mxu0 0
    %1163 = vmatpush1.bf16.msra.mxu0 0
    %1164 = vmatprep.subr.bf16.mxu0 0
    %1165 = vmatpush1.bf16.msra.mxu0 0
    %1166 = vmatprep.subr.bf16.mxu0 0
    %1167 = vmatpush1.bf16.msra.mxu0 0
    %1168 = vmatprep.subr.bf16.mxu0 0
    %1169 = vmatpush1.bf16.msra.mxu0 0
    %1170 = vmatprep.subr.bf16.mxu0 0
    %1171 = vmatpush1.bf16.msra.mxu0 0
    %1172 = vmatprep.subr.bf16.mxu0 0
    %1173 = vmatpush1.bf16.msra.mxu0 0
    %1174 = vmatprep.mubr.bf16.mxu0 0
    %1175 = vmatmul.mubr.bf16.gmra.mrb[0].mxu0 %v1140
    %v1176 = vpop.f32.mrb[0].mxu0
    %v1177 = vadd.f32 %v1116, %v1176
    %v1178 = vpop.f32.mrb[0].mxu0
    %v1179 = vpop.f32.mrb[0].mxu0
    %v1180 = vadd.f32 %v1119, %v1179
    %v1181 = vpop.f32.mrb[0].mxu0
    %1182 = vdwg.mxu0
    %v1183 = vld [vmem:[#allocation3 + $0x2] sm:$0xff]
    %v1184 = vld [vmem:[#allocation3 + $0x12] sm:$0xff]
    %v1185 = vpack.c.bf16 %v1183, %v1183
    %v1186 = vpack.c.bf16 %v1184, %v1184
    %s1187 = scalar_lea.vmem %s6, 32
    %v1188 = vld [vmem:[%s1187] sm:$0xf]
    %v1189 = vld [vmem:[%s1187 + $0x4] sm:$0xf]
    %v1190 = vld [vmem:[%s1187 + $0x8] sm:$0xf]
    %v1191 = vld [vmem:[%s1187 + $0xc] sm:$0xf]
    %v1194 = vunpack.c.l.b16 %v1185
    %v1195 = vunpack.c.l.b16 %v1186
    %v1196 = vpack.c.b16 %v1195, %v1194
    %v1201 = vunpack.c.l.b16 %v1188
    %v1202 = vunpack.c.l.b16 %v1189
    %v1203 = vunpack.c.l.b16 %v1190
    %v1204 = vunpack.c.l.b16 %v1191
    %v1205 = vpack.c.b16 %v1202, %v1201
    %v1206 = vpack.c.b16 %v1204, %v1203
    %v1210 = vsel %vm787, %v1196, 0
    %1212 = vmatprep.subr.bf16.mxu0 0
    %1213 = vmatpush1.bf16.msra.mxu0 %v1205
    %1214 = vmatprep.subr.bf16.mxu0 0
    %1215 = vmatpush1.bf16.msra.mxu0 %v1206
    %1216 = vmatprep.subr.bf16.mxu0 0
    %1217 = vmatpush1.bf16.msra.mxu0 0
    %1218 = vmatprep.subr.bf16.mxu0 0
    %1219 = vmatpush1.bf16.msra.mxu0 0
    %1220 = vmatprep.subr.bf16.mxu0 0
    %1221 = vmatpush1.bf16.msra.mxu0 0
    %1222 = vmatprep.subr.bf16.mxu0 0
    %1223 = vmatpush1.bf16.msra.mxu0 0
    %1224 = vmatprep.subr.bf16.mxu0 0
    %1225 = vmatpush1.bf16.msra.mxu0 0
    %1226 = vmatprep.subr.bf16.mxu0 0
    %1227 = vmatpush1.bf16.msra.mxu0 0
    %1228 = vmatprep.subr.bf16.mxu0 0
    %1229 = vmatpush1.bf16.msra.mxu0 0
    %1230 = vmatprep.subr.bf16.mxu0 0
    %1231 = vmatpush1.bf16.msra.mxu0 0
    %1232 = vmatprep.subr.bf16.mxu0 0
    %1233 = vmatpush1.bf16.msra.mxu0 0
    %1234 = vmatprep.subr.bf16.mxu0 0
    %1235 = vmatpush1.bf16.msra.mxu0 0
    %1236 = vmatprep.subr.bf16.mxu0 0
    %1237 = vmatpush1.bf16.msra.mxu0 0
    %1238 = vmatprep.subr.bf16.mxu0 0
    %1239 = vmatpush1.bf16.msra.mxu0 0
    %1240 = vmatprep.subr.bf16.mxu0 0
    %1241 = vmatpush1.bf16.msra.mxu0 0
    %1242 = vmatprep.subr.bf16.mxu0 0
    %1243 = vmatpush1.bf16.msra.mxu0 0
    %1244 = vmatprep.mubr.bf16.mxu0 0
    %1245 = vmatmul.mubr.bf16.gmra.mrb[0].mxu0 %v1210
    %v1246 = vpop.f32.mrb[0].mxu0
    %v1247 = vadd.f32 0.0, %v1246
    %v1248 = vpop.f32.mrb[0].mxu0
    %v1249 = vpop.f32.mrb[0].mxu0
    %v1250 = vadd.f32 0.0, %v1249
    %v1251 = vpop.f32.mrb[0].mxu0
    %1252 = vdwg.mxu0
    %v1253 = vadd.f32 %v1177, %v1247
    %v1254 = vadd.f32 %v1180, %v1250
    %v1255 = vld [vmem:[%s7] sm:$0x1]
    %v1257 = vlaneseq
    %v1258 = vshrl.u32 %v1257, 7
    %v1259 = vsub.s32 0, %v1258
    %v1260 = vrot.slane %v1255, %v1259
    %v1262 = vadd.f32 %v1253, %v1260
    %v1263 = vadd.f32 %v1254, %v1260
    %v1264 = vadd.f32 %v1262, %v808
    %v1265 = vadd.f32 %v1263, %v809
    %v1266 = vmax.f32 %v1264, 0.0
    %v1267 = vmax.f32 %v1265, 0.0
    %v1268 = vsel %vm787, %v1266, 0.0
    %v1269 = vrot.slane %v1268, 4
    %v1270 = vadd.f32 %v1268, %v1269
    %v1271 = vrot.slane %v1270, 2
    %v1272 = vadd.f32 %v1270, %v1271
    %v1273 = vrot.slane %v1272, 1
    %v1274 = vadd.f32 %v1272, %v1273
    %v1275 = vsel %vm787, %v1267, 0.0
    %v1276 = vrot.slane %v1275, 4
    %v1277 = vadd.f32 %v1275, %v1276
    %v1278 = vrot.slane %v1277, 2
    %v1279 = vadd.f32 %v1277, %v1278
    %v1280 = vrot.slane %v1279, 1
    %v1281 = vadd.f32 %v1279, %v1280
    %v1282 = vrcp.pop 8.0
    %v1283 = vmul.f32 %v1274, %v1282
    %v1284 = vmul.f32 %v1281, %v1282
    %v1285 = vld [vmem:[%s8] sm:$0xff]
    %v1286 = vld [vmem:[%s8 + $0x8] sm:$0xff]
    %v1287 = vld [vmem:[%s8 + $0x10] sm:$0xff]
    %v1288 = vld [vmem:[%s8 + $0x18] sm:$0xff]
    %v1289 = vld [vmem:[%s9] sm:$0x1]
    %v1291 = vlaneseq
    %v1292 = vshrl.u32 %v1291, 7
    %v1293 = vsub.s32 0, %v1292
    %v1294 = vrot.slane %v1289, %v1293
    %vm1298 = vcmask 1041409
    %v1299 = vsel %vm1298, %v1284, %v1283
    %v1300 = vsel %vm787, %v1299, 0
    %1302 = vmatprep.subr.mxu0 0.0
    %1303 = vmatpush1.msra.mxu0 %v1285
    %1304 = vmatprep.subr.mxu0 0.0
    %1305 = vmatpush1.msra.mxu0 %v1286
    %1306 = vmatprep.subr.mxu0 0.0
    %1307 = vmatpush1.msra.mxu0 %v1287
    %1308 = vmatprep.subr.mxu0 0.0
    %1309 = vmatpush1.msra.mxu0 %v1288
    %1310 = vmatprep.subr.mxu0 0.0
    %1311 = vmatpush1.msra.mxu0 0.0
    %1312 = vmatprep.subr.mxu0 0.0
    %1313 = vmatpush1.msra.mxu0 0.0
    %1314 = vmatprep.subr.mxu0 0.0
    %1315 = vmatpush1.msra.mxu0 0.0
    %1316 = vmatprep.subr.mxu0 0.0
    %1317 = vmatpush1.msra.mxu0 0.0
    %1318 = vmatprep.subr.mxu0 0.0
    %1319 = vmatpush1.msra.mxu0 0.0
    %1320 = vmatprep.subr.mxu0 0.0
    %1321 = vmatpush1.msra.mxu0 0.0
    %1322 = vmatprep.subr.mxu0 0.0
    %1323 = vmatpush1.msra.mxu0 0.0
    %1324 = vmatprep.subr.mxu0 0.0
    %1325 = vmatpush1.msra.mxu0 0.0
    %1326 = vmatprep.subr.mxu0 0.0
    %1327 = vmatpush1.msra.mxu0 0.0
    %1328 = vmatprep.subr.mxu0 0.0
    %1329 = vmatpush1.msra.mxu0 0.0
    %1330 = vmatprep.subr.mxu0 0.0
    %1331 = vmatpush1.msra.mxu0 0.0
    %1332 = vmatprep.subr.mxu0 0.0
    %1333 = vmatpush1.msra.mxu0 0.0
    %1334 = vmatprep.subr.mxu0 0.0
    %1335 = vmatpush1.msra.mxu0 0.0
    %1336 = vmatprep.subr.mxu0 0.0
    %1337 = vmatpush1.msra.mxu0 0.0
    %1338 = vmatprep.subr.mxu0 0.0
    %1339 = vmatpush1.msra.mxu0 0.0
    %1340 = vmatprep.subr.mxu0 0.0
    %1341 = vmatpush1.msra.mxu0 0.0
    %1342 = vmatprep.subr.mxu0 0.0
    %1343 = vmatpush1.msra.mxu0 0.0
    %1344 = vmatprep.subr.mxu0 0.0
    %1345 = vmatpush1.msra.mxu0 0.0
    %1346 = vmatprep.subr.mxu0 0.0
    %1347 = vmatpush1.msra.mxu0 0.0
    %1348 = vmatprep.subr.mxu0 0.0
    %1349 = vmatpush1.msra.mxu0 0.0
    %1350 = vmatprep.subr.mxu0 0.0
    %1351 = vmatpush1.msra.mxu0 0.0
    %1352 = vmatprep.subr.mxu0 0.0
    %1353 = vmatpush1.msra.mxu0 0.0
    %1354 = vmatprep.subr.mxu0 0.0
    %1355 = vmatpush1.msra.mxu0 0.0
    %1356 = vmatprep.subr.mxu0 0.0
    %1357 = vmatpush1.msra.mxu0 0.0
    %1358 = vmatprep.subr.mxu0 0.0
    %1359 = vmatpush1.msra.mxu0 0.0
    %1360 = vmatprep.subr.mxu0 0.0
    %1361 = vmatpush1.msra.mxu0 0.0
    %1362 = vmatprep.subr.mxu0 0.0
    %1363 = vmatpush1.msra.mxu0 0.0
    %1364 = vmatprep.subr.mxu0 0.0
    %1365 = vmatpush1.msra.mxu0 0.0
    %1366 = vmatprep.mubr.f32.mxu0 0.0
    %1367 = vmatmul.mubr.f32.gmra.mrb[0].mxu0 %v1300
    %v1368 = vpop.f32.mrb[0].mxu0
    %v1369 = vadd.f32 %v1294, %v1368
    %v1370 = vpop.f32.mrb[0].mxu0
    %1371 = vdwg.mxu0
    %vm1372 = vcmask 74752
    %1373 = vst.msk [vmem:[#allocation4] sm:$0x3] %vm1372, %v1369
    // Predicated region
    $region42: #{resnet_like_1d_forward.1} parent=1 // pred_check
      _
    $region43: #{resnet_like_1d_forward.1} parent=1 // pred_check_branch
      %1375 = sbr.rel (0) target = $region45
    $region44: #{resnet_like_1d_forward.1} parent=1 // pred_region
      %s1377 = ssub.s32 32, 32
      %1378 = vsyncadd [#allocation5], %s1377
      %s1380 = sshll.u32 [#allocation4], 4
      %s1381 = int_to_ptr.vmem [resolvable:$true] %s1380
      %1383 = dma.vmem_to_hbm [thread:$0]  %s1381, 32, %s10, [#allocation5]
    $region45: #{resnet_like_1d_forward.1} parent=1 // pred_fallthru
      _
    // Predicated region
    $region46: #{resnet_like_1d_forward.1} parent=1 // pred_check
      _
    $region47: #{resnet_like_1d_forward.1} parent=1 // pred_check_branch
      %1385 = sbr.rel (0) target = $region49
    $region48: #{resnet_like_1d_forward.1} parent=1 // pred_region
      %1386 = dma.done [#allocation5], 32
    $region49: #{resnet_like_1d_forward.1} parent=1 // pred_fallthru
      _
    %1387 = vsyncpa [#allocation5], 1

</llo_original>
